<compile_context>
chip_gen: v6e
topology: v6e:2x2x1
jax: 0.10.0
libtpu: 0.0.40
codegen_flags: <defaults>
</compile_context>

<pallas_src>
import functools

import jax
import jax.numpy as jnp
from jax import lax
from jax.experimental import pallas as pl
from jax.experimental.pallas import tpu as pltpu

# ----------------------------- model config ---------------------------------
VOCAB_SIZE = 50
VOCAB_PAD = 64        # vocab padded to a clean contraction size (never selected rows)
EMBED_DIM = 16
HIDDEN_DIM = 32
NUM_LAYERS = 2
NUM_CLASSES = 4
BATCH = 8             # multiple of 8: fills the vreg sublane dimension
SEQ_LEN = 8


# ------------------------------- kernel --------------------------------------
def tweet_lstm_kernel(ids_ref, w_ref, out_ref, *, seq_len, batch, hidden_dim,
                      vocab_pad, num_classes):
    T, B, H = seq_len, batch, hidden_dim
    V, C = vocab_pad, num_classes
    f32 = jnp.float32

    # ---- static views into the single packed weight block -------------------
    w_rec    = w_ref[0:2 * H, :]                              # (2H, 8H) block matrix
    emb_proj = w_ref[2 * H:2 * H + V, 0:4 * H]                # (V, 4H), b0 folded in
    wfc      = w_ref[2 * H:2 * H + H, 4 * H:8 * H]            # (H, 4H), cols >= C are 0
    b1       = w_ref[2 * H + V:2 * H + V + 1, 0:4 * H]        # (1, 4H)
    bfc      = w_ref[2 * H + V:2 * H + V + 1, 4 * H:8 * H]    # (1, 4H), cols >= C are 0

    # Hoisted once (broadcast_in_dim is not CSE'd by JAX).
    b1_vec = jnp.broadcast_to(b1, (B, 4 * H))

    # ---- embedding gather + layer-0 input projection: one one-hot matmul ----
    ids = ids_ref[...]                                        # (T*B, 1) int32, time-major
    vocab_iota = lax.broadcasted_iota(jnp.int32, (T * B, V), 1)
    one_hot = jnp.where(ids == vocab_iota, 1.0, 0.0).astype(f32)       # (T*B, V)
    gates0_x = jnp.dot(one_hot, emb_proj, preferred_element_type=f32)  # (T*B, 4H)

    # ---- LSTM cell helpers (PyTorch native gate order [i, f, g, o]) ---------
    def gate_parts(gates):
        sig = jax.nn.sigmoid(gates)                           # i/f/o lanes (g lanes unused)
        i = sig[:, :H]                                        # lanes [0,  H)  (aligned)
        f = pltpu.roll(sig, 3 * H, axis=1)[:, :H]             # lanes [H, 2H)  -> [0, H)
        g = jnp.tanh(pltpu.roll(gates, 2 * H, axis=1)[:, :H]) # lanes [2H,3H)  -> [0, H)
        o = pltpu.roll(sig, H, axis=1)[:, :H]                 # lanes [3H,4H)  -> [0, H)
        return i, f, g, o

    def cell(gates, c_prev):
        i, f, g, o = gate_parts(gates)
        c = f * c_prev + i * g
        return o * jnp.tanh(c), c

    def cell_first(gates):                                    # h_prev = c_prev = 0
        i, _, g, o = gate_parts(gates)
        c = i * g
        return o * jnp.tanh(c), c

    # ---- fused two-layer recurrence: layer 1 runs one step behind layer 0 ---
    h0, c0 = cell_first(gates0_x[0:B, :])                     # layer 0, t = 0 (no matmul)
    h1 = jnp.zeros((B, H), f32)
    c1 = jnp.zeros((B, H), f32)

    for s in range(1, T + 1):                                 # fully unrolled (T static)
        # One 256-wide recurrent matmul per pipeline step:
        #   [h0_{s-1} | h1_{s-2}] @ [[Whh0, Wih1], [0, Whh1]]
        lhs = jnp.concatenate([h0, h1], axis=1)               # (B, 2H)
        big = jnp.dot(lhs, w_rec, preferred_element_type=f32) # (B, 8H)
        g1 = big[:, 4 * H:] + b1_vec                          # layer-1 gates, time s-1
        if s < T:                                             # layer 0, time s
            g0 = gates0_x[s * B:(s + 1) * B, :] + big[:, :4 * H]
            h0, c0 = cell(g0, c0)
        if s == 1:                                            # layer 1, time 0 (c_prev = 0)
            h1, c1 = cell_first(g1)
        else:
            h1, c1 = cell(g1, c1)

    # ---- fc(out[:, -1, :]) at full lane width, then slice to C --------------
    logits = jnp.dot(h1, wfc, preferred_element_type=f32) + bfc       # (B, 4H)
    out_ref[...] = logits[:, :C]


# --------------------------- one-time weight packing --------------------------
def pack_params(params):
    """One-time repack of all weights into a single lane-padded VMEM block.

    Layout of the (136, 256) f32 block:
      rows [0, 64)   cols [0, 256): block recurrent matrix [[Whh0, Wih1],[0, Whh1]]
      rows [64, 128) cols [0, 128): embedding @ W_ih0^T + b0   (vocab padded to 64)
      rows [64, 96)  cols [128,256): W_fc^T (only first C cols nonzero)
      row  128       cols [0, 128): b_ih1 + b_hh1
      row  128       cols [128,256): b_fc (only first C cols nonzero)
    """
    H, V, C, VP = HIDDEN_DIM, VOCAB_SIZE, NUM_CLASSES, VOCAB_PAD
    f32 = jnp.float32

    wih0_t = params["w_ih0"].astype(f32).T           # (E, 4H)
    whh0_t = params["w_hh0"].astype(f32).T           # (H, 4H)
    b0 = (params["b_ih0"] + params["b_hh0"]).astype(f32)
    wih1_t = params["w_ih1"].astype(f32).T           # (H, 4H)
    whh1_t = params["w_hh1"].astype(f32).T           # (H, 4H)
    b1 = (params["b_ih1"] + params["b_hh1"]).astype(f32)
    wfc_t = params["w_fc"].astype(f32).T              # (H, C)
    bfc = params["b_fc"].astype(f32)                  # (C,)

    # Embedding lookup + layer-0 input projection + bias folded into one table.
    emb_proj = params["embedding"].astype(f32) @ wih0_t + b0[None, :]   # (V, 4H)
    emb_proj = jnp.pad(emb_proj, ((0, VP - V), (0, 0)))                 # (VP, 4H)

    # Block recurrent matrix for [h0 | h1] @ [[Whh0, Wih1], [0, Whh1]].
    w_rec = jnp.zeros((2 * H, 8 * H), f32)
    w_rec = w_rec.at[:H, :4 * H].set(whh0_t)
    w_rec = w_rec.at[:H, 4 * H:].set(wih1_t)
    w_rec = w_rec.at[H:, 4 * H:].set(whh1_t)

    rows = 2 * H + VP + 8                             # 136 (multiple of 8)
    wpack = jnp.zeros((rows, 8 * H), f32)
    wpack = wpack.at[0:2 * H, :].set(w_rec)
    wpack = wpack.at[2 * H:2 * H + VP, 0:4 * H].set(emb_proj)
    wpack = wpack.at[2 * H:2 * H + H, 4 * H:4 * H + C].set(wfc_t)
    wpack = wpack.at[2 * H + VP, 0:4 * H].set(b1)
    wpack = wpack.at[2 * H + VP, 4 * H:4 * H + C].set(bfc)
    return wpack


# ------------------------------- wrapper -------------------------------------
@jax.jit
def tweet_lstm_forward(token_ids, wpack):
    """token_ids: (B, T) int32, wpack: packed weights -> (B, NUM_CLASSES) f32."""
    B, T = token_ids.shape
    # Only per-call glue: tiny (B, T) int ids -> time-major (T*B, 1) column.
    ids_tm = jnp.transpose(token_ids).reshape(T * B, 1).astype(jnp.int32)

    kernel = functools.partial(
        tweet_lstm_kernel, seq_len=T, batch=B, hidden_dim=HIDDEN_DIM,
        vocab_pad=VOCAB_PAD, num_classes=NUM_CLASSES)

    vmem = pl.BlockSpec(memory_space=pltpu.MemorySpace.VMEM)
    return pl.pallas_call(
        kernel,
        out_shape=jax.ShapeDtypeStruct((B, NUM_CLASSES), jnp.float32),
        in_specs=[vmem, vmem],
        out_specs=vmem,
    )(ids_tm, wpack)


# --------------------------- params & reference -------------------------------
def init_params(key):
    """Deterministic synthetic parameters, PyTorch-style layout / gate order."""
    ks = jax.random.split(key, 12)
    H, E, V, C = HIDDEN_DIM, EMBED_DIM, VOCAB_SIZE, NUM_CLASSES
    scale = 1.0 / jnp.sqrt(jnp.float32(H))

    def u(k, shape):
        return jax.random.uniform(k, shape, jnp.float32, -scale, scale)

    return {
        "embedding": jax.random.normal(ks[0], (V, E), jnp.float32),
        # layer 0 (input size E) -- PyTorch layout (4H, in), gate order [i,f,g,o]
        "w_ih0": u(ks[1], (4 * H, E)),
        "w_hh0": u(ks[2], (4 * H, H)),
        "b_ih0": u(ks[3], (4 * H,)),
        "b_hh0": u(ks[4], (4 * H,)),
        # layer 1 (input size H)
        "w_ih1": u(ks[5], (4 * H, H)),
        "w_hh1": u(ks[6], (4 * H, H)),
        "b_ih1": u(ks[7], (4 * H,)),
        "b_hh1": u(ks[8], (4 * H,)),
        # fc
        "w_fc": u(ks[9], (C, H)),
        "b_fc": u(ks[10], (C,)),
    }


def tweet_lstm_reference(token_ids, params):
    """Pure-JAX reference matching PyTorch nn.LSTM eval-mode semantics."""
    B = token_ids.shape[0]
    H = HIDDEN_DIM
    emb = jnp.take(params["embedding"], token_ids, axis=0)   # (B, T, E)

    def lstm_layer(x_seq, w_ih, w_hh, b_ih, b_hh):
        def step(carry, x_t):
            h, c = carry
            gates = x_t @ w_ih.T + h @ w_hh.T + b_ih + b_hh
            i = jax.nn.sigmoid(gates[:, 0 * H:1 * H])
            f = jax.nn.sigmoid(gates[:, 1 * H:2 * H])
            g = jnp.tanh(gates[:, 2 * H:3 * H])
            o = jax.nn.sigmoid(gates[:, 3 * H:4 * H])
            c = f * c + i * g
            h = o * jnp.tanh(c)
            return (h, c), h

        init = (jnp.zeros((B, H), jnp.float32), jnp.zeros((B, H), jnp.float32))
        _, hs = lax.scan(step, init, jnp.transpose(x_seq, (1, 0, 2)))
        return jnp.transpose(hs, (1, 0, 2))                  # (B, T, H)

    h1 = lstm_layer(emb, params["w_ih0"], params["w_hh0"],
                    params["b_ih0"], params["b_hh0"])
    h2 = lstm_layer(h1, params["w_ih1"], params["w_hh1"],
                    params["b_ih1"], params["b_hh1"])
    return h2[:, -1, :] @ params["w_fc"].T + params["b_fc"][None, :]


if __name__ == "__main__":
    key = jax.random.PRNGKey(0)
    pkey, xkey = jax.random.split(key)
    params = init_params(pkey)

    token_ids = jax.random.randint(
        xkey, (BATCH, SEQ_LEN), 0, VOCAB_SIZE, dtype=jnp.int32
    )

    # One-time weight packing (cached / hoisted out of the per-call path).
    wpack = jax.block_until_ready(pack_params(params))

    logits = tweet_lstm_forward(token_ids, wpack)
    jax.block_until_ready(logits)

    assert logits.shape == (BATCH, NUM_CLASSES)
    assert logits.dtype == jnp.float32

    ref = tweet_lstm_reference(token_ids, params)
    err = float(jnp.max(jnp.abs(logits - ref)))
    assert jnp.allclose(logits, ref, atol=1e-4, rtol=1e-4), f"max abs err = {err}"

    print("KERNEL_OK")
</pallas_src>

<mosaic_0001>
module attributes {stable_mosaic.version = 11 : i64} {
  func.func @tweet_lstm_kernel(%arg0: memref<64x1xi32, #tpu.memory_space<vmem>>, %arg1: memref<136x256xf32, #tpu.memory_space<vmem>>, %arg2: memref<8x4xf32, #tpu.memory_space<vmem>>) attributes {dimension_semantics = [], scalar_prefetch = 0 : i64, scratch_operands = 0 : i64, tpu.core_type = #tpu.core_type<tc>} {
    %c0 = arith.constant 0 : index
    %c0_0 = arith.constant 0 : index
    %0 = vector.load %arg1[%c0, %c0_0] : memref<136x256xf32, #tpu.memory_space<vmem>>, vector<64x256xf32>
    %c64 = arith.constant 64 : index
    %c0_1 = arith.constant 0 : index
    %1 = vector.load %arg1[%c64, %c0_1] : memref<136x256xf32, #tpu.memory_space<vmem>>, vector<64x128xf32>
    %c64_2 = arith.constant 64 : index
    %c128 = arith.constant 128 : index
    %2 = vector.load %arg1[%c64_2, %c128] : memref<136x256xf32, #tpu.memory_space<vmem>>, vector<32x128xf32>
    %c128_3 = arith.constant 128 : index
    %c0_4 = arith.constant 0 : index
    %3 = vector.load %arg1[%c128_3, %c0_4] : memref<136x256xf32, #tpu.memory_space<vmem>>, vector<1x128xf32>
    %c128_5 = arith.constant 128 : index
    %c128_6 = arith.constant 128 : index
    %4 = vector.load %arg1[%c128_5, %c128_6] : memref<136x256xf32, #tpu.memory_space<vmem>>, vector<1x128xf32>
    %5 = vector.shape_cast %3 : vector<1x128xf32> to vector<1x128xf32>
    %6 = vector.broadcast %5 : vector<1x128xf32> to vector<8x128xf32>
    %c0_7 = arith.constant 0 : index
    %c0_8 = arith.constant 0 : index
    %7 = vector.load %arg0[%c0_7, %c0_8] : memref<64x1xi32, #tpu.memory_space<vmem>>, vector<64x1xi32>
    %8 = tpu.iota {dimensions = array<i32: 1>} : vector<64x64xi32>
    %9 = vector.broadcast %7 : vector<64x1xi32> to vector<64x64xi32>
    %10 = arith.cmpi eq, %9, %8 : vector<64x64xi32>
    %cst = arith.constant 1.000000e+00 : f32
    %cst_9 = arith.constant 0.000000e+00 : f32
    %11 = vector.broadcast %cst : f32 to vector<64x64xf32>
    %12 = vector.broadcast %cst_9 : f32 to vector<64x64xf32>
    %13 = arith.select %10, %11, %12 : vector<64x64xi1>, vector<64x64xf32>
    %cst_10 = arith.constant dense<0.000000e+00> : vector<64x128xf32>
    %14 = tpu.matmul %13, %1, %cst_10 {dimension_numbers = #tpu.dot_dimension_numbers<[1], [0], [0], [1], [0, 0, 1, 1], [], []>} : vector<64x64xf32>, vector<64x128xf32>, vector<64x128xf32> -> vector<64x128xf32>
    %15 = vector.extract_strided_slice %14 {offsets = [0, 0], sizes = [8, 128], strides = [1, 1]} : vector<64x128xf32> to vector<8x128xf32>
    %16 = arith.negf %15 : vector<8x128xf32>
    %17 = math.exp %16 : vector<8x128xf32>
    %cst_11 = arith.constant 1.000000e+00 : f32
    %18 = vector.broadcast %cst_11 : f32 to vector<8x128xf32>
    %19 = arith.addf %18, %17 : vector<8x128xf32>
    %20 = arith.divf %18, %19 : vector<8x128xf32>
    %21 = vector.extract_strided_slice %20 {offsets = [0, 0], sizes = [8, 32], strides = [1, 1]} : vector<8x128xf32> to vector<8x32xf32>
    %c64_i32 = arith.constant 64 : i32
    %22 = tpu.dynamic_rotate %15 by %c64_i32 dim 1 : vector<8x128xf32>, i32 -> vector<8x128xf32>
    %23 = vector.extract_strided_slice %22 {offsets = [0, 0], sizes = [8, 32], strides = [1, 1]} : vector<8x128xf32> to vector<8x32xf32>
    %24 = math.tanh %23 : vector<8x32xf32>
    %c32_i32 = arith.constant 32 : i32
    %25 = tpu.dynamic_rotate %20 by %c32_i32 dim 1 : vector<8x128xf32>, i32 -> vector<8x128xf32>
    %26 = vector.extract_strided_slice %25 {offsets = [0, 0], sizes = [8, 32], strides = [1, 1]} : vector<8x128xf32> to vector<8x32xf32>
    %27 = arith.mulf %21, %24 : vector<8x32xf32>
    %28 = math.tanh %27 : vector<8x32xf32>
    %29 = arith.mulf %26, %28 : vector<8x32xf32>
    %cst_12 = arith.constant 0.000000e+00 : f32
    %30 = vector.broadcast %cst_12 : f32 to vector<8x32xf32>
    %31 = tpu.concatenate %29, %30 in 1 : vector<8x32xf32>, vector<8x32xf32> -> vector<8x64xf32>
    %cst_13 = arith.constant dense<0.000000e+00> : vector<8x256xf32>
    %32 = tpu.matmul %31, %0, %cst_13 {dimension_numbers = #tpu.dot_dimension_numbers<[1], [0], [0], [1], [0, 0, 1, 1], [], []>} : vector<8x64xf32>, vector<64x256xf32>, vector<8x256xf32> -> vector<8x256xf32>
    %33 = vector.extract_strided_slice %32 {offsets = [0, 128], sizes = [8, 128], strides = [1, 1]} : vector<8x256xf32> to vector<8x128xf32>
    %34 = arith.addf %33, %6 : vector<8x128xf32>
    %35 = vector.extract_strided_slice %14 {offsets = [8, 0], sizes = [8, 128], strides = [1, 1]} : vector<64x128xf32> to vector<8x128xf32>
    %36 = vector.extract_strided_slice %32 {offsets = [0, 0], sizes = [8, 128], strides = [1, 1]} : vector<8x256xf32> to vector<8x128xf32>
    %37 = arith.addf %35, %36 : vector<8x128xf32>
    %38 = arith.negf %37 : vector<8x128xf32>
    %39 = math.exp %38 : vector<8x128xf32>
    %cst_14 = arith.constant 1.000000e+00 : f32
    %40 = vector.broadcast %cst_14 : f32 to vector<8x128xf32>
    %41 = arith.addf %40, %39 : vector<8x128xf32>
    %42 = arith.divf %40, %41 : vector<8x128xf32>
    %43 = vector.extract_strided_slice %42 {offsets = [0, 0], sizes = [8, 32], strides = [1, 1]} : vector<8x128xf32> to vector<8x32xf32>
    %c96_i32 = arith.constant 96 : i32
    %44 = tpu.dynamic_rotate %42 by %c96_i32 dim 1 : vector<8x128xf32>, i32 -> vector<8x128xf32>
    %45 = vector.extract_strided_slice %44 {offsets = [0, 0], sizes = [8, 32], strides = [1, 1]} : vector<8x128xf32> to vector<8x32xf32>
    %c64_i32_15 = arith.constant 64 : i32
    %46 = tpu.dynamic_rotate %37 by %c64_i32_15 dim 1 : vector<8x128xf32>, i32 -> vector<8x128xf32>
    %47 = vector.extract_strided_slice %46 {offsets = [0, 0], sizes = [8, 32], strides = [1, 1]} : vector<8x128xf32> to vector<8x32xf32>
    %48 = math.tanh %47 : vector<8x32xf32>
    %c32_i32_16 = arith.constant 32 : i32
    %49 = tpu.dynamic_rotate %42 by %c32_i32_16 dim 1 : vector<8x128xf32>, i32 -> vector<8x128xf32>
    %50 = vector.extract_strided_slice %49 {offsets = [0, 0], sizes = [8, 32], strides = [1, 1]} : vector<8x128xf32> to vector<8x32xf32>
    %51 = arith.mulf %45, %27 : vector<8x32xf32>
    %52 = arith.mulf %43, %48 : vector<8x32xf32>
    %53 = arith.addf %51, %52 : vector<8x32xf32>
    %54 = math.tanh %53 : vector<8x32xf32>
    %55 = arith.mulf %50, %54 : vector<8x32xf32>
    %56 = arith.negf %34 : vector<8x128xf32>
    %57 = math.exp %56 : vector<8x128xf32>
    %cst_17 = arith.constant 1.000000e+00 : f32
    %58 = vector.broadcast %cst_17 : f32 to vector<8x128xf32>
    %59 = arith.addf %58, %57 : vector<8x128xf32>
    %60 = arith.divf %58, %59 : vector<8x128xf32>
    %61 = vector.extract_strided_slice %60 {offsets = [0, 0], sizes = [8, 32], strides = [1, 1]} : vector<8x128xf32> to vector<8x32xf32>
    %c64_i32_18 = arith.constant 64 : i32
    %62 = tpu.dynamic_rotate %34 by %c64_i32_18 dim 1 : vector<8x128xf32>, i32 -> vector<8x128xf32>
    %63 = vector.extract_strided_slice %62 {offsets = [0, 0], sizes = [8, 32], strides = [1, 1]} : vector<8x128xf32> to vector<8x32xf32>
    %64 = math.tanh %63 : vector<8x32xf32>
    %c32_i32_19 = arith.constant 32 : i32
    %65 = tpu.dynamic_rotate %60 by %c32_i32_19 dim 1 : vector<8x128xf32>, i32 -> vector<8x128xf32>
    %66 = vector.extract_strided_slice %65 {offsets = [0, 0], sizes = [8, 32], strides = [1, 1]} : vector<8x128xf32> to vector<8x32xf32>
    %67 = arith.mulf %61, %64 : vector<8x32xf32>
    %68 = math.tanh %67 : vector<8x32xf32>
    %69 = arith.mulf %66, %68 : vector<8x32xf32>
    %70 = tpu.concatenate %55, %69 in 1 : vector<8x32xf32>, vector<8x32xf32> -> vector<8x64xf32>
    %cst_20 = arith.constant dense<0.000000e+00> : vector<8x256xf32>
    %71 = tpu.matmul %70, %0, %cst_20 {dimension_numbers = #tpu.dot_dimension_numbers<[1], [0], [0], [1], [0, 0, 1, 1], [], []>} : vector<8x64xf32>, vector<64x256xf32>, vector<8x256xf32> -> vector<8x256xf32>
    %72 = vector.extract_strided_slice %71 {offsets = [0, 128], sizes = [8, 128], strides = [1, 1]} : vector<8x256xf32> to vector<8x128xf32>
    %73 = arith.addf %72, %6 : vector<8x128xf32>
    %74 = vector.extract_strided_slice %14 {offsets = [16, 0], sizes = [8, 128], strides = [1, 1]} : vector<64x128xf32> to vector<8x128xf32>
    %75 = vector.extract_strided_slice %71 {offsets = [0, 0], sizes = [8, 128], strides = [1, 1]} : vector<8x256xf32> to vector<8x128xf32>
    %76 = arith.addf %74, %75 : vector<8x128xf32>
    %77 = arith.negf %76 : vector<8x128xf32>
    %78 = math.exp %77 : vector<8x128xf32>
    %cst_21 = arith.constant 1.000000e+00 : f32
    %79 = vector.broadcast %cst_21 : f32 to vector<8x128xf32>
    %80 = arith.addf %79, %78 : vector<8x128xf32>
    %81 = arith.divf %79, %80 : vector<8x128xf32>
    %82 = vector.extract_strided_slice %81 {offsets = [0, 0], sizes = [8, 32], strides = [1, 1]} : vector<8x128xf32> to vector<8x32xf32>
    %c96_i32_22 = arith.constant 96 : i32
    %83 = tpu.dynamic_rotate %81 by %c96_i32_22 dim 1 : vector<8x128xf32>, i32 -> vector<8x128xf32>
    %84 = vector.extract_strided_slice %83 {offsets = [0, 0], sizes = [8, 32], strides = [1, 1]} : vector<8x128xf32> to vector<8x32xf32>
    %c64_i32_23 = arith.constant 64 : i32
    %85 = tpu.dynamic_rotate %76 by %c64_i32_23 dim 1 : vector<8x128xf32>, i32 -> vector<8x128xf32>
    %86 = vector.extract_strided_slice %85 {offsets = [0, 0], sizes = [8, 32], strides = [1, 1]} : vector<8x128xf32> to vector<8x32xf32>
    %87 = math.tanh %86 : vector<8x32xf32>
    %c32_i32_24 = arith.constant 32 : i32
    %88 = tpu.dynamic_rotate %81 by %c32_i32_24 dim 1 : vector<8x128xf32>, i32 -> vector<8x128xf32>
    %89 = vector.extract_strided_slice %88 {offsets = [0, 0], sizes = [8, 32], strides = [1, 1]} : vector<8x128xf32> to vector<8x32xf32>
    %90 = arith.mulf %84, %53 : vector<8x32xf32>
    %91 = arith.mulf %82, %87 : vector<8x32xf32>
    %92 = arith.addf %90, %91 : vector<8x32xf32>
    %93 = math.tanh %92 : vector<8x32xf32>
    %94 = arith.mulf %89, %93 : vector<8x32xf32>
    %95 = arith.negf %73 : vector<8x128xf32>
    %96 = math.exp %95 : vector<8x128xf32>
    %cst_25 = arith.constant 1.000000e+00 : f32
    %97 = vector.broadcast %cst_25 : f32 to vector<8x128xf32>
    %98 = arith.addf %97, %96 : vector<8x128xf32>
    %99 = arith.divf %97, %98 : vector<8x128xf32>
    %100 = vector.extract_strided_slice %99 {offsets = [0, 0], sizes = [8, 32], strides = [1, 1]} : vector<8x128xf32> to vector<8x32xf32>
    %c96_i32_26 = arith.constant 96 : i32
    %101 = tpu.dynamic_rotate %99 by %c96_i32_26 dim 1 : vector<8x128xf32>, i32 -> vector<8x128xf32>
    %102 = vector.extract_strided_slice %101 {offsets = [0, 0], sizes = [8, 32], strides = [1, 1]} : vector<8x128xf32> to vector<8x32xf32>
    %c64_i32_27 = arith.constant 64 : i32
    %103 = tpu.dynamic_rotate %73 by %c64_i32_27 dim 1 : vector<8x128xf32>, i32 -> vector<8x128xf32>
    %104 = vector.extract_strided_slice %103 {offsets = [0, 0], sizes = [8, 32], strides = [1, 1]} : vector<8x128xf32> to vector<8x32xf32>
    %105 = math.tanh %104 : vector<8x32xf32>
    %c32_i32_28 = arith.constant 32 : i32
    %106 = tpu.dynamic_rotate %99 by %c32_i32_28 dim 1 : vector<8x128xf32>, i32 -> vector<8x128xf32>
    %107 = vector.extract_strided_slice %106 {offsets = [0, 0], sizes = [8, 32], strides = [1, 1]} : vector<8x128xf32> to vector<8x32xf32>
    %108 = arith.mulf %102, %67 : vector<8x32xf32>
    %109 = arith.mulf %100, %105 : vector<8x32xf32>
    %110 = arith.addf %108, %109 : vector<8x32xf32>
    %111 = math.tanh %110 : vector<8x32xf32>
    %112 = arith.mulf %107, %111 : vector<8x32xf32>
    %113 = tpu.concatenate %94, %112 in 1 : vector<8x32xf32>, vector<8x32xf32> -> vector<8x64xf32>
    %cst_29 = arith.constant dense<0.000000e+00> : vector<8x256xf32>
    %114 = tpu.matmul %113, %0, %cst_29 {dimension_numbers = #tpu.dot_dimension_numbers<[1], [0], [0], [1], [0, 0, 1, 1], [], []>} : vector<8x64xf32>, vector<64x256xf32>, vector<8x256xf32> -> vector<8x256xf32>
    %115 = vector.extract_strided_slice %114 {offsets = [0, 128], sizes = [8, 128], strides = [1, 1]} : vector<8x256xf32> to vector<8x128xf32>
    %116 = arith.addf %115, %6 : vector<8x128xf32>
    %117 = vector.extract_strided_slice %14 {offsets = [24, 0], sizes = [8, 128], strides = [1, 1]} : vector<64x128xf32> to vector<8x128xf32>
    %118 = vector.extract_strided_slice %114 {offsets = [0, 0], sizes = [8, 128], strides = [1, 1]} : vector<8x256xf32> to vector<8x128xf32>
    %119 = arith.addf %117, %118 : vector<8x128xf32>
    %120 = arith.negf %119 : vector<8x128xf32>
    %121 = math.exp %120 : vector<8x128xf32>
    %cst_30 = arith.constant 1.000000e+00 : f32
    %122 = vector.broadcast %cst_30 : f32 to vector<8x128xf32>
    %123 = arith.addf %122, %121 : vector<8x128xf32>
    %124 = arith.divf %122, %123 : vector<8x128xf32>
    %125 = vector.extract_strided_slice %124 {offsets = [0, 0], sizes = [8, 32], strides = [1, 1]} : vector<8x128xf32> to vector<8x32xf32>
    %c96_i32_31 = arith.constant 96 : i32
    %126 = tpu.dynamic_rotate %124 by %c96_i32_31 dim 1 : vector<8x128xf32>, i32 -> vector<8x128xf32>
    %127 = vector.extract_strided_slice %126 {offsets = [0, 0], sizes = [8, 32], strides = [1, 1]} : vector<8x128xf32> to vector<8x32xf32>
    %c64_i32_32 = arith.constant 64 : i32
    %128 = tpu.dynamic_rotate %119 by %c64_i32_32 dim 1 : vector<8x128xf32>, i32 -> vector<8x128xf32>
    %129 = vector.extract_strided_slice %128 {offsets = [0, 0], sizes = [8, 32], strides = [1, 1]} : vector<8x128xf32> to vector<8x32xf32>
    %130 = math.tanh %129 : vector<8x32xf32>
    %c32_i32_33 = arith.constant 32 : i32
    %131 = tpu.dynamic_rotate %124 by %c32_i32_33 dim 1 : vector<8x128xf32>, i32 -> vector<8x128xf32>
    %132 = vector.extract_strided_slice %131 {offsets = [0, 0], sizes = [8, 32], strides = [1, 1]} : vector<8x128xf32> to vector<8x32xf32>
    %133 = arith.mulf %127, %92 : vector<8x32xf32>
    %134 = arith.mulf %125, %130 : vector<8x32xf32>
    %135 = arith.addf %133, %134 : vector<8x32xf32>
    %136 = math.tanh %135 : vector<8x32xf32>
    %137 = arith.mulf %132, %136 : vector<8x32xf32>
    %138 = arith.negf %116 : vector<8x128xf32>
    %139 = math.exp %138 : vector<8x128xf32>
    %cst_34 = arith.constant 1.000000e+00 : f32
    %140 = vector.broadcast %cst_34 : f32 to vector<8x128xf32>
    %141 = arith.addf %140, %139 : vector<8x128xf32>
    %142 = arith.divf %140, %141 : vector<8x128xf32>
    %143 = vector.extract_strided_slice %142 {offsets = [0, 0], sizes = [8, 32], strides = [1, 1]} : vector<8x128xf32> to vector<8x32xf32>
    %c96_i32_35 = arith.constant 96 : i32
    %144 = tpu.dynamic_rotate %142 by %c96_i32_35 dim 1 : vector<8x128xf32>, i32 -> vector<8x128xf32>
    %145 = vector.extract_strided_slice %144 {offsets = [0, 0], sizes = [8, 32], strides = [1, 1]} : vector<8x128xf32> to vector<8x32xf32>
    %c64_i32_36 = arith.constant 64 : i32
    %146 = tpu.dynamic_rotate %116 by %c64_i32_36 dim 1 : vector<8x128xf32>, i32 -> vector<8x128xf32>
    %147 = vector.extract_strided_slice %146 {offsets = [0, 0], sizes = [8, 32], strides = [1, 1]} : vector<8x128xf32> to vector<8x32xf32>
    %148 = math.tanh %147 : vector<8x32xf32>
    %c32_i32_37 = arith.constant 32 : i32
    %149 = tpu.dynamic_rotate %142 by %c32_i32_37 dim 1 : vector<8x128xf32>, i32 -> vector<8x128xf32>
    %150 = vector.extract_strided_slice %149 {offsets = [0, 0], sizes = [8, 32], strides = [1, 1]} : vector<8x128xf32> to vector<8x32xf32>
    %151 = arith.mulf %145, %110 : vector<8x32xf32>
    %152 = arith.mulf %143, %148 : vector<8x32xf32>
    %153 = arith.addf %151, %152 : vector<8x32xf32>
    %154 = math.tanh %153 : vector<8x32xf32>
    %155 = arith.mulf %150, %154 : vector<8x32xf32>
    %156 = tpu.concatenate %137, %155 in 1 : vector<8x32xf32>, vector<8x32xf32> -> vector<8x64xf32>
    %cst_38 = arith.constant dense<0.000000e+00> : vector<8x256xf32>
    %157 = tpu.matmul %156, %0, %cst_38 {dimension_numbers = #tpu.dot_dimension_numbers<[1], [0], [0], [1], [0, 0, 1, 1], [], []>} : vector<8x64xf32>, vector<64x256xf32>, vector<8x256xf32> -> vector<8x256xf32>
    %158 = vector.extract_strided_slice %157 {offsets = [0, 128], sizes = [8, 128], strides = [1, 1]} : vector<8x256xf32> to vector<8x128xf32>
    %159 = arith.addf %158, %6 : vector<8x128xf32>
    %160 = vector.extract_strided_slice %14 {offsets = [32, 0], sizes = [8, 128], strides = [1, 1]} : vector<64x128xf32> to vector<8x128xf32>
    %161 = vector.extract_strided_slice %157 {offsets = [0, 0], sizes = [8, 128], strides = [1, 1]} : vector<8x256xf32> to vector<8x128xf32>
    %162 = arith.addf %160, %161 : vector<8x128xf32>
    %163 = arith.negf %162 : vector<8x128xf32>
    %164 = math.exp %163 : vector<8x128xf32>
    %cst_39 = arith.constant 1.000000e+00 : f32
    %165 = vector.broadcast %cst_39 : f32 to vector<8x128xf32>
    %166 = arith.addf %165, %164 : vector<8x128xf32>
    %167 = arith.divf %165, %166 : vector<8x128xf32>
    %168 = vector.extract_strided_slice %167 {offsets = [0, 0], sizes = [8, 32], strides = [1, 1]} : vector<8x128xf32> to vector<8x32xf32>
    %c96_i32_40 = arith.constant 96 : i32
    %169 = tpu.dynamic_rotate %167 by %c96_i32_40 dim 1 : vector<8x128xf32>, i32 -> vector<8x128xf32>
    %170 = vector.extract_strided_slice %169 {offsets = [0, 0], sizes = [8, 32], strides = [1, 1]} : vector<8x128xf32> to vector<8x32xf32>
    %c64_i32_41 = arith.constant 64 : i32
    %171 = tpu.dynamic_rotate %162 by %c64_i32_41 dim 1 : vector<8x128xf32>, i32 -> vector<8x128xf32>
    %172 = vector.extract_strided_slice %171 {offsets = [0, 0], sizes = [8, 32], strides = [1, 1]} : vector<8x128xf32> to vector<8x32xf32>
    %173 = math.tanh %172 : vector<8x32xf32>
    %c32_i32_42 = arith.constant 32 : i32
    %174 = tpu.dynamic_rotate %167 by %c32_i32_42 dim 1 : vector<8x128xf32>, i32 -> vector<8x128xf32>
    %175 = vector.extract_strided_slice %174 {offsets = [0, 0], sizes = [8, 32], strides = [1, 1]} : vector<8x128xf32> to vector<8x32xf32>
    %176 = arith.mulf %170, %135 : vector<8x32xf32>
    %177 = arith.mulf %168, %173 : vector<8x32xf32>
    %178 = arith.addf %176, %177 : vector<8x32xf32>
    %179 = math.tanh %178 : vector<8x32xf32>
    %180 = arith.mulf %175, %179 : vector<8x32xf32>
    %181 = arith.negf %159 : vector<8x128xf32>
    %182 = math.exp %181 : vector<8x128xf32>
    %cst_43 = arith.constant 1.000000e+00 : f32
    %183 = vector.broadcast %cst_43 : f32 to vector<8x128xf32>
    %184 = arith.addf %183, %182 : vector<8x128xf32>
    %185 = arith.divf %183, %184 : vector<8x128xf32>
    %186 = vector.extract_strided_slice %185 {offsets = [0, 0], sizes = [8, 32], strides = [1, 1]} : vector<8x128xf32> to vector<8x32xf32>
    %c96_i32_44 = arith.constant 96 : i32
    %187 = tpu.dynamic_rotate %185 by %c96_i32_44 dim 1 : vector<8x128xf32>, i32 -> vector<8x128xf32>
    %188 = vector.extract_strided_slice %187 {offsets = [0, 0], sizes = [8, 32], strides = [1, 1]} : vector<8x128xf32> to vector<8x32xf32>
    %c64_i32_45 = arith.constant 64 : i32
    %189 = tpu.dynamic_rotate %159 by %c64_i32_45 dim 1 : vector<8x128xf32>, i32 -> vector<8x128xf32>
    %190 = vector.extract_strided_slice %189 {offsets = [0, 0], sizes = [8, 32], strides = [1, 1]} : vector<8x128xf32> to vector<8x32xf32>
    %191 = math.tanh %190 : vector<8x32xf32>
    %c32_i32_46 = arith.constant 32 : i32
    %192 = tpu.dynamic_rotate %185 by %c32_i32_46 dim 1 : vector<8x128xf32>, i32 -> vector<8x128xf32>
    %193 = vector.extract_strided_slice %192 {offsets = [0, 0], sizes = [8, 32], strides = [1, 1]} : vector<8x128xf32> to vector<8x32xf32>
    %194 = arith.mulf %188, %153 : vector<8x32xf32>
    %195 = arith.mulf %186, %191 : vector<8x32xf32>
    %196 = arith.addf %194, %195 : vector<8x32xf32>
    %197 = math.tanh %196 : vector<8x32xf32>
    %198 = arith.mulf %193, %197 : vector<8x32xf32>
    %199 = tpu.concatenate %180, %198 in 1 : vector<8x32xf32>, vector<8x32xf32> -> vector<8x64xf32>
    %cst_47 = arith.constant dense<0.000000e+00> : vector<8x256xf32>
    %200 = tpu.matmul %199, %0, %cst_47 {dimension_numbers = #tpu.dot_dimension_numbers<[1], [0], [0], [1], [0, 0, 1, 1], [], []>} : vector<8x64xf32>, vector<64x256xf32>, vector<8x256xf32> -> vector<8x256xf32>
    %201 = vector.extract_strided_slice %200 {offsets = [0, 128], sizes = [8, 128], strides = [1, 1]} : vector<8x256xf32> to vector<8x128xf32>
    %202 = arith.addf %201, %6 : vector<8x128xf32>
    %203 = vector.extract_strided_slice %14 {offsets = [40, 0], sizes = [8, 128], strides = [1, 1]} : vector<64x128xf32> to vector<8x128xf32>
    %204 = vector.extract_strided_slice %200 {offsets = [0, 0], sizes = [8, 128], strides = [1, 1]} : vector<8x256xf32> to vector<8x128xf32>
    %205 = arith.addf %203, %204 : vector<8x128xf32>
    %206 = arith.negf %205 : vector<8x128xf32>
    %207 = math.exp %206 : vector<8x128xf32>
    %cst_48 = arith.constant 1.000000e+00 : f32
    %208 = vector.broadcast %cst_48 : f32 to vector<8x128xf32>
    %209 = arith.addf %208, %207 : vector<8x128xf32>
    %210 = arith.divf %208, %209 : vector<8x128xf32>
    %211 = vector.extract_strided_slice %210 {offsets = [0, 0], sizes = [8, 32], strides = [1, 1]} : vector<8x128xf32> to vector<8x32xf32>
    %c96_i32_49 = arith.constant 96 : i32
    %212 = tpu.dynamic_rotate %210 by %c96_i32_49 dim 1 : vector<8x128xf32>, i32 -> vector<8x128xf32>
    %213 = vector.extract_strided_slice %212 {offsets = [0, 0], sizes = [8, 32], strides = [1, 1]} : vector<8x128xf32> to vector<8x32xf32>
    %c64_i32_50 = arith.constant 64 : i32
    %214 = tpu.dynamic_rotate %205 by %c64_i32_50 dim 1 : vector<8x128xf32>, i32 -> vector<8x128xf32>
    %215 = vector.extract_strided_slice %214 {offsets = [0, 0], sizes = [8, 32], strides = [1, 1]} : vector<8x128xf32> to vector<8x32xf32>
    %216 = math.tanh %215 : vector<8x32xf32>
    %c32_i32_51 = arith.constant 32 : i32
    %217 = tpu.dynamic_rotate %210 by %c32_i32_51 dim 1 : vector<8x128xf32>, i32 -> vector<8x128xf32>
    %218 = vector.extract_strided_slice %217 {offsets = [0, 0], sizes = [8, 32], strides = [1, 1]} : vector<8x128xf32> to vector<8x32xf32>
    %219 = arith.mulf %213, %178 : vector<8x32xf32>
    %220 = arith.mulf %211, %216 : vector<8x32xf32>
    %221 = arith.addf %219, %220 : vector<8x32xf32>
    %222 = math.tanh %221 : vector<8x32xf32>
    %223 = arith.mulf %218, %222 : vector<8x32xf32>
    %224 = arith.negf %202 : vector<8x128xf32>
    %225 = math.exp %224 : vector<8x128xf32>
    %cst_52 = arith.constant 1.000000e+00 : f32
    %226 = vector.broadcast %cst_52 : f32 to vector<8x128xf32>
    %227 = arith.addf %226, %225 : vector<8x128xf32>
    %228 = arith.divf %226, %227 : vector<8x128xf32>
    %229 = vector.extract_strided_slice %228 {offsets = [0, 0], sizes = [8, 32], strides = [1, 1]} : vector<8x128xf32> to vector<8x32xf32>
    %c96_i32_53 = arith.constant 96 : i32
    %230 = tpu.dynamic_rotate %228 by %c96_i32_53 dim 1 : vector<8x128xf32>, i32 -> vector<8x128xf32>
    %231 = vector.extract_strided_slice %230 {offsets = [0, 0], sizes = [8, 32], strides = [1, 1]} : vector<8x128xf32> to vector<8x32xf32>
    %c64_i32_54 = arith.constant 64 : i32
    %232 = tpu.dynamic_rotate %202 by %c64_i32_54 dim 1 : vector<8x128xf32>, i32 -> vector<8x128xf32>
    %233 = vector.extract_strided_slice %232 {offsets = [0, 0], sizes = [8, 32], strides = [1, 1]} : vector<8x128xf32> to vector<8x32xf32>
    %234 = math.tanh %233 : vector<8x32xf32>
    %c32_i32_55 = arith.constant 32 : i32
    %235 = tpu.dynamic_rotate %228 by %c32_i32_55 dim 1 : vector<8x128xf32>, i32 -> vector<8x128xf32>
    %236 = vector.extract_strided_slice %235 {offsets = [0, 0], sizes = [8, 32], strides = [1, 1]} : vector<8x128xf32> to vector<8x32xf32>
    %237 = arith.mulf %231, %196 : vector<8x32xf32>
    %238 = arith.mulf %229, %234 : vector<8x32xf32>
    %239 = arith.addf %237, %238 : vector<8x32xf32>
    %240 = math.tanh %239 : vector<8x32xf32>
    %241 = arith.mulf %236, %240 : vector<8x32xf32>
    %242 = tpu.concatenate %223, %241 in 1 : vector<8x32xf32>, vector<8x32xf32> -> vector<8x64xf32>
    %cst_56 = arith.constant dense<0.000000e+00> : vector<8x256xf32>
    %243 = tpu.matmul %242, %0, %cst_56 {dimension_numbers = #tpu.dot_dimension_numbers<[1], [0], [0], [1], [0, 0, 1, 1], [], []>} : vector<8x64xf32>, vector<64x256xf32>, vector<8x256xf32> -> vector<8x256xf32>
    %244 = vector.extract_strided_slice %243 {offsets = [0, 128], sizes = [8, 128], strides = [1, 1]} : vector<8x256xf32> to vector<8x128xf32>
    %245 = arith.addf %244, %6 : vector<8x128xf32>
    %246 = vector.extract_strided_slice %14 {offsets = [48, 0], sizes = [8, 128], strides = [1, 1]} : vector<64x128xf32> to vector<8x128xf32>
    %247 = vector.extract_strided_slice %243 {offsets = [0, 0], sizes = [8, 128], strides = [1, 1]} : vector<8x256xf32> to vector<8x128xf32>
    %248 = arith.addf %246, %247 : vector<8x128xf32>
    %249 = arith.negf %248 : vector<8x128xf32>
    %250 = math.exp %249 : vector<8x128xf32>
    %cst_57 = arith.constant 1.000000e+00 : f32
    %251 = vector.broadcast %cst_57 : f32 to vector<8x128xf32>
    %252 = arith.addf %251, %250 : vector<8x128xf32>
    %253 = arith.divf %251, %252 : vector<8x128xf32>
    %254 = vector.extract_strided_slice %253 {offsets = [0, 0], sizes = [8, 32], strides = [1, 1]} : vector<8x128xf32> to vector<8x32xf32>
    %c96_i32_58 = arith.constant 96 : i32
    %255 = tpu.dynamic_rotate %253 by %c96_i32_58 dim 1 : vector<8x128xf32>, i32 -> vector<8x128xf32>
    %256 = vector.extract_strided_slice %255 {offsets = [0, 0], sizes = [8, 32], strides = [1, 1]} : vector<8x128xf32> to vector<8x32xf32>
    %c64_i32_59 = arith.constant 64 : i32
    %257 = tpu.dynamic_rotate %248 by %c64_i32_59 dim 1 : vector<8x128xf32>, i32 -> vector<8x128xf32>
    %258 = vector.extract_strided_slice %257 {offsets = [0, 0], sizes = [8, 32], strides = [1, 1]} : vector<8x128xf32> to vector<8x32xf32>
    %259 = math.tanh %258 : vector<8x32xf32>
    %c32_i32_60 = arith.constant 32 : i32
    %260 = tpu.dynamic_rotate %253 by %c32_i32_60 dim 1 : vector<8x128xf32>, i32 -> vector<8x128xf32>
    %261 = vector.extract_strided_slice %260 {offsets = [0, 0], sizes = [8, 32], strides = [1, 1]} : vector<8x128xf32> to vector<8x32xf32>
    %262 = arith.mulf %256, %221 : vector<8x32xf32>
    %263 = arith.mulf %254, %259 : vector<8x32xf32>
    %264 = arith.addf %262, %263 : vector<8x32xf32>
    %265 = math.tanh %264 : vector<8x32xf32>
    %266 = arith.mulf %261, %265 : vector<8x32xf32>
    %267 = arith.negf %245 : vector<8x128xf32>
    %268 = math.exp %267 : vector<8x128xf32>
    %cst_61 = arith.constant 1.000000e+00 : f32
    %269 = vector.broadcast %cst_61 : f32 to vector<8x128xf32>
    %270 = arith.addf %269, %268 : vector<8x128xf32>
    %271 = arith.divf %269, %270 : vector<8x128xf32>
    %272 = vector.extract_strided_slice %271 {offsets = [0, 0], sizes = [8, 32], strides = [1, 1]} : vector<8x128xf32> to vector<8x32xf32>
    %c96_i32_62 = arith.constant 96 : i32
    %273 = tpu.dynamic_rotate %271 by %c96_i32_62 dim 1 : vector<8x128xf32>, i32 -> vector<8x128xf32>
    %274 = vector.extract_strided_slice %273 {offsets = [0, 0], sizes = [8, 32], strides = [1, 1]} : vector<8x128xf32> to vector<8x32xf32>
    %c64_i32_63 = arith.constant 64 : i32
    %275 = tpu.dynamic_rotate %245 by %c64_i32_63 dim 1 : vector<8x128xf32>, i32 -> vector<8x128xf32>
    %276 = vector.extract_strided_slice %275 {offsets = [0, 0], sizes = [8, 32], strides = [1, 1]} : vector<8x128xf32> to vector<8x32xf32>
    %277 = math.tanh %276 : vector<8x32xf32>
    %c32_i32_64 = arith.constant 32 : i32
    %278 = tpu.dynamic_rotate %271 by %c32_i32_64 dim 1 : vector<8x128xf32>, i32 -> vector<8x128xf32>
    %279 = vector.extract_strided_slice %278 {offsets = [0, 0], sizes = [8, 32], strides = [1, 1]} : vector<8x128xf32> to vector<8x32xf32>
    %280 = arith.mulf %274, %239 : vector<8x32xf32>
    %281 = arith.mulf %272, %277 : vector<8x32xf32>
    %282 = arith.addf %280, %281 : vector<8x32xf32>
    %283 = math.tanh %282 : vector<8x32xf32>
    %284 = arith.mulf %279, %283 : vector<8x32xf32>
    %285 = tpu.concatenate %266, %284 in 1 : vector<8x32xf32>, vector<8x32xf32> -> vector<8x64xf32>
    %cst_65 = arith.constant dense<0.000000e+00> : vector<8x256xf32>
    %286 = tpu.matmul %285, %0, %cst_65 {dimension_numbers = #tpu.dot_dimension_numbers<[1], [0], [0], [1], [0, 0, 1, 1], [], []>} : vector<8x64xf32>, vector<64x256xf32>, vector<8x256xf32> -> vector<8x256xf32>
    %287 = vector.extract_strided_slice %286 {offsets = [0, 128], sizes = [8, 128], strides = [1, 1]} : vector<8x256xf32> to vector<8x128xf32>
    %288 = arith.addf %287, %6 : vector<8x128xf32>
    %289 = vector.extract_strided_slice %14 {offsets = [56, 0], sizes = [8, 128], strides = [1, 1]} : vector<64x128xf32> to vector<8x128xf32>
    %290 = vector.extract_strided_slice %286 {offsets = [0, 0], sizes = [8, 128], strides = [1, 1]} : vector<8x256xf32> to vector<8x128xf32>
    %291 = arith.addf %289, %290 : vector<8x128xf32>
    %292 = arith.negf %291 : vector<8x128xf32>
    %293 = math.exp %292 : vector<8x128xf32>
    %cst_66 = arith.constant 1.000000e+00 : f32
    %294 = vector.broadcast %cst_66 : f32 to vector<8x128xf32>
    %295 = arith.addf %294, %293 : vector<8x128xf32>
    %296 = arith.divf %294, %295 : vector<8x128xf32>
    %297 = vector.extract_strided_slice %296 {offsets = [0, 0], sizes = [8, 32], strides = [1, 1]} : vector<8x128xf32> to vector<8x32xf32>
    %c96_i32_67 = arith.constant 96 : i32
    %298 = tpu.dynamic_rotate %296 by %c96_i32_67 dim 1 : vector<8x128xf32>, i32 -> vector<8x128xf32>
    %299 = vector.extract_strided_slice %298 {offsets = [0, 0], sizes = [8, 32], strides = [1, 1]} : vector<8x128xf32> to vector<8x32xf32>
    %c64_i32_68 = arith.constant 64 : i32
    %300 = tpu.dynamic_rotate %291 by %c64_i32_68 dim 1 : vector<8x128xf32>, i32 -> vector<8x128xf32>
    %301 = vector.extract_strided_slice %300 {offsets = [0, 0], sizes = [8, 32], strides = [1, 1]} : vector<8x128xf32> to vector<8x32xf32>
    %302 = math.tanh %301 : vector<8x32xf32>
    %c32_i32_69 = arith.constant 32 : i32
    %303 = tpu.dynamic_rotate %296 by %c32_i32_69 dim 1 : vector<8x128xf32>, i32 -> vector<8x128xf32>
    %304 = vector.extract_strided_slice %303 {offsets = [0, 0], sizes = [8, 32], strides = [1, 1]} : vector<8x128xf32> to vector<8x32xf32>
    %305 = arith.mulf %299, %264 : vector<8x32xf32>
    %306 = arith.mulf %297, %302 : vector<8x32xf32>
    %307 = arith.addf %305, %306 : vector<8x32xf32>
    %308 = math.tanh %307 : vector<8x32xf32>
    %309 = arith.mulf %304, %308 : vector<8x32xf32>
    %310 = arith.negf %288 : vector<8x128xf32>
    %311 = math.exp %310 : vector<8x128xf32>
    %cst_70 = arith.constant 1.000000e+00 : f32
    %312 = vector.broadcast %cst_70 : f32 to vector<8x128xf32>
    %313 = arith.addf %312, %311 : vector<8x128xf32>
    %314 = arith.divf %312, %313 : vector<8x128xf32>
    %315 = vector.extract_strided_slice %314 {offsets = [0, 0], sizes = [8, 32], strides = [1, 1]} : vector<8x128xf32> to vector<8x32xf32>
    %c96_i32_71 = arith.constant 96 : i32
    %316 = tpu.dynamic_rotate %314 by %c96_i32_71 dim 1 : vector<8x128xf32>, i32 -> vector<8x128xf32>
    %317 = vector.extract_strided_slice %316 {offsets = [0, 0], sizes = [8, 32], strides = [1, 1]} : vector<8x128xf32> to vector<8x32xf32>
    %c64_i32_72 = arith.constant 64 : i32
    %318 = tpu.dynamic_rotate %288 by %c64_i32_72 dim 1 : vector<8x128xf32>, i32 -> vector<8x128xf32>
    %319 = vector.extract_strided_slice %318 {offsets = [0, 0], sizes = [8, 32], strides = [1, 1]} : vector<8x128xf32> to vector<8x32xf32>
    %320 = math.tanh %319 : vector<8x32xf32>
    %c32_i32_73 = arith.constant 32 : i32
    %321 = tpu.dynamic_rotate %314 by %c32_i32_73 dim 1 : vector<8x128xf32>, i32 -> vector<8x128xf32>
    %322 = vector.extract_strided_slice %321 {offsets = [0, 0], sizes = [8, 32], strides = [1, 1]} : vector<8x128xf32> to vector<8x32xf32>
    %323 = arith.mulf %317, %282 : vector<8x32xf32>
    %324 = arith.mulf %315, %320 : vector<8x32xf32>
    %325 = arith.addf %323, %324 : vector<8x32xf32>
    %326 = math.tanh %325 : vector<8x32xf32>
    %327 = arith.mulf %322, %326 : vector<8x32xf32>
    %328 = tpu.concatenate %309, %327 in 1 : vector<8x32xf32>, vector<8x32xf32> -> vector<8x64xf32>
    %cst_74 = arith.constant dense<0.000000e+00> : vector<8x256xf32>
    %329 = tpu.matmul %328, %0, %cst_74 {dimension_numbers = #tpu.dot_dimension_numbers<[1], [0], [0], [1], [0, 0, 1, 1], [], []>} : vector<8x64xf32>, vector<64x256xf32>, vector<8x256xf32> -> vector<8x256xf32>
    %330 = vector.extract_strided_slice %329 {offsets = [0, 128], sizes = [8, 128], strides = [1, 1]} : vector<8x256xf32> to vector<8x128xf32>
    %331 = arith.addf %330, %6 : vector<8x128xf32>
    %332 = arith.negf %331 : vector<8x128xf32>
    %333 = math.exp %332 : vector<8x128xf32>
    %cst_75 = arith.constant 1.000000e+00 : f32
    %334 = vector.broadcast %cst_75 : f32 to vector<8x128xf32>
    %335 = arith.addf %334, %333 : vector<8x128xf32>
    %336 = arith.divf %334, %335 : vector<8x128xf32>
    %337 = vector.extract_strided_slice %336 {offsets = [0, 0], sizes = [8, 32], strides = [1, 1]} : vector<8x128xf32> to vector<8x32xf32>
    %c96_i32_76 = arith.constant 96 : i32
    %338 = tpu.dynamic_rotate %336 by %c96_i32_76 dim 1 : vector<8x128xf32>, i32 -> vector<8x128xf32>
    %339 = vector.extract_strided_slice %338 {offsets = [0, 0], sizes = [8, 32], strides = [1, 1]} : vector<8x128xf32> to vector<8x32xf32>
    %c64_i32_77 = arith.constant 64 : i32
    %340 = tpu.dynamic_rotate %331 by %c64_i32_77 dim 1 : vector<8x128xf32>, i32 -> vector<8x128xf32>
    %341 = vector.extract_strided_slice %340 {offsets = [0, 0], sizes = [8, 32], strides = [1, 1]} : vector<8x128xf32> to vector<8x32xf32>
    %342 = math.tanh %341 : vector<8x32xf32>
    %c32_i32_78 = arith.constant 32 : i32
    %343 = tpu.dynamic_rotate %336 by %c32_i32_78 dim 1 : vector<8x128xf32>, i32 -> vector<8x128xf32>
    %344 = vector.extract_strided_slice %343 {offsets = [0, 0], sizes = [8, 32], strides = [1, 1]} : vector<8x128xf32> to vector<8x32xf32>
    %345 = arith.mulf %339, %325 : vector<8x32xf32>
    %346 = arith.mulf %337, %342 : vector<8x32xf32>
    %347 = arith.addf %345, %346 : vector<8x32xf32>
    %348 = math.tanh %347 : vector<8x32xf32>
    %349 = arith.mulf %344, %348 : vector<8x32xf32>
    %cst_79 = arith.constant dense<0.000000e+00> : vector<8x128xf32>
    %350 = tpu.matmul %349, %2, %cst_79 {dimension_numbers = #tpu.dot_dimension_numbers<[1], [0], [0], [1], [0, 0, 1, 1], [], []>} : vector<8x32xf32>, vector<32x128xf32>, vector<8x128xf32> -> vector<8x128xf32>
    %351 = vector.broadcast %4 : vector<1x128xf32> to vector<8x128xf32>
    %352 = arith.addf %350, %351 : vector<8x128xf32>
    %353 = vector.extract_strided_slice %352 {offsets = [0, 0], sizes = [8, 4], strides = [1, 1]} : vector<8x128xf32> to vector<8x4xf32>
    %c0_80 = arith.constant 0 : index
    %c0_81 = arith.constant 0 : index
    %354 = vector.load %arg2[%c0_80, %c0_81] : memref<8x4xf32, #tpu.memory_space<vmem>>, vector<8x4xf32>
    tpu.vector_store %arg2[%c0_80, %c0_81], %353 {strides = array<i32>} : memref<8x4xf32, #tpu.memory_space<vmem>>, vector<8x4xf32>,
    return
  }
}

</mosaic_0001>

<llo_original>
// kernel: tweet_lstm_forward.1
$region0: #{tweet_lstm_forward.1}
  #allocation0 [shape = 'u32[]', space=smem, size = 0x4, offset = 0x4, fixed_abs, tag = 'smem constant byte address 0x4 - core index']
  #allocation1 [shape = 'u32[144,128]{1,0:T(1,128)}', space=vmem, size = 0x12000, scoped, tag = 'internal scratch']
  %s0 = inlined_call_operand.vmem [shape: s32[64,1], index: 0, kind: input, shape index: {}]
  %s1 = inlined_call_operand.hbm [shape: f32[136,256], index: 1, kind: input, shape index: {}]
  %s2 = inlined_call_operand.vmem [shape: f32[8,4], index: 2, kind: output, shape index: {}]
  %s3 = sld [smem:[#allocation0]]
  $region22: #{tweet_lstm_forward.1} parent=0
    _
  %s5 = ssub.s32 1, %s3
  %s6 = scalar_select 0, %s5, %s3
  $region1: #{tweet_lstm_forward.1} parent=0
    #allocation2 [shape = 'u8[139264]{0}', space=vmem, size = 0x22000, scoped, tag = 'input window, operand 1, single buffered']
    #allocation3 [shape = 's32[1]{0}', space=sflag, size = 0x4, scoped, tag = 'scoped memory for tweet_lstm_forward.1']
    %7 = vsyncpa [#allocation3], 0
    // Predicated region
    $region2: #{tweet_lstm_forward.1} parent=1 // pred_check
      _
    $region3: #{tweet_lstm_forward.1} parent=1 // pred_check_branch
      %9 = sbr.rel (0) target = $region5
    $region4: #{tweet_lstm_forward.1} parent=1 // pred_region
      _
    $region5: #{tweet_lstm_forward.1} parent=1 // pred_fallthru
      _
    // Predicated region
    $region6: #{tweet_lstm_forward.1} parent=1 // pred_check
      _
    $region7: #{tweet_lstm_forward.1} parent=1 // pred_check_branch
      %11 = sbr.rel (0) target = $region9
    $region8: #{tweet_lstm_forward.1} parent=1 // pred_region
      %s13 = ssub.s32 4352, 4352
      %14 = vsyncadd [#allocation3], %s13
      %s15 = sshll.u32 [#allocation2], 4
      %s16 = int_to_ptr.vmem [resolvable:$true] %s15
      %21 = dma.hbm_to_vmem [thread:$0]  %s1, 4352, %s16, [#allocation3], 256, 256, 16
    $region9: #{tweet_lstm_forward.1} parent=1 // pred_fallthru
      _
    // Predicated region
    $region10: #{tweet_lstm_forward.1} parent=1 // pred_check
      _
    $region11: #{tweet_lstm_forward.1} parent=1 // pred_check_branch
      %23 = sbr.rel (0) target = $region13
    $region12: #{tweet_lstm_forward.1} parent=1 // pred_region
      %24 = dma.done [#allocation3], 4352
    $region13: #{tweet_lstm_forward.1} parent=1 // pred_fallthru
      _
    %v25 = vld [vmem:[#allocation2] sm:$0xff]
    %v26 = vld [vmem:[#allocation2 + $0x8] sm:$0xff]
    %v27 = vld [vmem:[#allocation2 + $0x10] sm:$0xff]
    %v28 = vld [vmem:[#allocation2 + $0x18] sm:$0xff]
    %v29 = vld [vmem:[#allocation2 + $0x20] sm:$0xff]
    %v30 = vld [vmem:[#allocation2 + $0x28] sm:$0xff]
    %v31 = vld [vmem:[#allocation2 + $0x30] sm:$0xff]
    %v32 = vld [vmem:[#allocation2 + $0x38] sm:$0xff]
    %v33 = vld [vmem:[#allocation2 + $0x40] sm:$0xff]
    %v34 = vld [vmem:[#allocation2 + $0x48] sm:$0xff]
    %v35 = vld [vmem:[#allocation2 + $0x50] sm:$0xff]
    %v36 = vld [vmem:[#allocation2 + $0x58] sm:$0xff]
    %v37 = vld [vmem:[#allocation2 + $0x60] sm:$0xff]
    %v38 = vld [vmem:[#allocation2 + $0x68] sm:$0xff]
    %v39 = vld [vmem:[#allocation2 + $0x70] sm:$0xff]
    %v40 = vld [vmem:[#allocation2 + $0x78] sm:$0xff]
    %v41 = vld [vmem:[#allocation2 + $0x80] sm:$0xff]
    %v42 = vld [vmem:[#allocation2 + $0x90] sm:$0xff]
    %v43 = vld [vmem:[#allocation2 + $0xa0] sm:$0xff]
    %v44 = vld [vmem:[#allocation2 + $0xb0] sm:$0xff]
    %v45 = vld [vmem:[#allocation2 + $0xc0] sm:$0xff]
    %v46 = vld [vmem:[#allocation2 + $0xd0] sm:$0xff]
    %v47 = vld [vmem:[#allocation2 + $0xe0] sm:$0xff]
    %v48 = vld [vmem:[#allocation2 + $0xf0] sm:$0xff]
    %v49 = vld [vmem:[#allocation2 + $0x88] sm:$0xff]
    %v50 = vld [vmem:[#allocation2 + $0x98] sm:$0xff]
    %v51 = vld [vmem:[#allocation2 + $0xa8] sm:$0xff]
    %v52 = vld [vmem:[#allocation2 + $0xb8] sm:$0xff]
    %v53 = vld [vmem:[#allocation2 + $0x100] ss:$0 sm:$0xff]
    %v54 = vld [vmem:[#allocation2 + $0x108] ss:$0 sm:$0xff]
    %v55 = vld [vmem:[%s0] sm:$0xff]
    %v56 = vld [vmem:[%s0 + $0x8] sm:$0xff]
    %v57 = vld [vmem:[%s0 + $0x10] sm:$0xff]
    %v58 = vld [vmem:[%s0 + $0x18] sm:$0xff]
    %v59 = vld [vmem:[%s0 + $0x20] sm:$0xff]
    %v60 = vld [vmem:[%s0 + $0x28] sm:$0xff]
    %v61 = vld [vmem:[%s0 + $0x30] sm:$0xff]
    %v62 = vld [vmem:[%s0 + $0x38] sm:$0xff]
    %v63 = vlaneseq
    %v64 = vand.u32 %v63, 127
    %65 = vset.pattern.permute.xlu0 0
    %66 = vperm.xlu0 %65, %v55
    %v67 = vpop.permute.xlu0 %66
    %68 = vset.pattern.permute.xlu0 0
    %69 = vperm.xlu0 %68, %v56
    %v70 = vpop.permute.xlu0 %69
    %71 = vset.pattern.permute.xlu0 0
    %72 = vperm.xlu0 %71, %v57
    %v73 = vpop.permute.xlu0 %72
    %74 = vset.pattern.permute.xlu0 0
    %75 = vperm.xlu0 %74, %v58
    %v76 = vpop.permute.xlu0 %75
    %77 = vset.pattern.permute.xlu0 0
    %78 = vperm.xlu0 %77, %v59
    %v79 = vpop.permute.xlu0 %78
    %80 = vset.pattern.permute.xlu0 0
    %81 = vperm.xlu0 %80, %v60
    %v82 = vpop.permute.xlu0 %81
    %83 = vset.pattern.permute.xlu0 0
    %84 = vperm.xlu0 %83, %v61
    %v85 = vpop.permute.xlu0 %84
    %86 = vset.pattern.permute.xlu0 0
    %87 = vperm.xlu0 %86, %v62
    %v88 = vpop.permute.xlu0 %87
    %vm89 = vcmp.eq.s32.totalorder %v67, %v64
    %vm90 = vcmp.eq.s32.totalorder %v70, %v64
    %vm91 = vcmp.eq.s32.totalorder %v73, %v64
    %vm92 = vcmp.eq.s32.totalorder %v76, %v64
    %vm93 = vcmp.eq.s32.totalorder %v79, %v64
    %vm94 = vcmp.eq.s32.totalorder %v82, %v64
    %vm95 = vcmp.eq.s32.totalorder %v85, %v64
    %vm96 = vcmp.eq.s32.totalorder %v88, %v64
    %v97 = vsel %vm89, 1.0, 0.0
    %v98 = vsel %vm90, 1.0, 0.0
    %v99 = vsel %vm91, 1.0, 0.0
    %v100 = vsel %vm92, 1.0, 0.0
    %v101 = vsel %vm93, 1.0, 0.0
    %v102 = vsel %vm94, 1.0, 0.0
    %v103 = vsel %vm95, 1.0, 0.0
    %v104 = vsel %vm96, 1.0, 0.0
    %vm105 = vcmask 523264
    %v107 = vsel %vm105, %v97, 0
    %v110 = vsel %vm105, %v98, 0
    %v113 = vsel %vm105, %v99, 0
    %v116 = vsel %vm105, %v100, 0
    %v119 = vsel %vm105, %v101, 0
    %v122 = vsel %vm105, %v102, 0
    %v125 = vsel %vm105, %v103, 0
    %v128 = vsel %vm105, %v104, 0
    %130 = vmatprep.subr.mxu0 0.0
    %131 = vmatpush1.msra.mxu0 0.0
    %132 = vmatprep.subr.mxu0 0.0
    %133 = vmatpush1.msra.mxu0 0.0
    %134 = vmatprep.subr.mxu0 0.0
    %135 = vmatpush1.msra.mxu0 0.0
    %136 = vmatprep.subr.mxu0 0.0
    %137 = vmatpush1.msra.mxu0 0.0
    %138 = vmatprep.subr.mxu0 0.0
    %139 = vmatpush1.msra.mxu0 0.0
    %140 = vmatprep.subr.mxu0 0.0
    %141 = vmatpush1.msra.mxu0 0.0
    %142 = vmatprep.subr.mxu0 0.0
    %143 = vmatpush1.msra.mxu0 0.0
    %144 = vmatprep.subr.mxu0 0.0
    %145 = vmatpush1.msra.mxu0 0.0
    %146 = vmatprep.subr.mxu0 0.0
    %147 = vmatpush1.msra.mxu0 %v48
    %148 = vmatprep.subr.mxu0 0.0
    %149 = vmatpush1.msra.mxu0 %v47
    %150 = vmatprep.subr.mxu0 0.0
    %151 = vmatpush1.msra.mxu0 %v46
    %152 = vmatprep.subr.mxu0 0.0
    %153 = vmatpush1.msra.mxu0 %v45
    %154 = vmatprep.subr.mxu0 0.0
    %155 = vmatpush1.msra.mxu0 %v44
    %156 = vmatprep.subr.mxu0 0.0
    %157 = vmatpush1.msra.mxu0 %v43
    %158 = vmatprep.subr.mxu0 0.0
    %159 = vmatpush1.msra.mxu0 %v42
    %160 = vmatprep.subr.mxu0 0.0
    %161 = vmatpush1.msra.mxu0 %v41
    %162 = vmatprep.subr.mxu0 0.0
    %163 = vmatpush2.msra.mxu0 0.0
    %164 = vmatprep.subr.mxu0 0.0
    %165 = vmatpush2.msra.mxu0 0.0
    %166 = vmatprep.subr.mxu0 0.0
    %167 = vmatpush2.msra.mxu0 0.0
    %168 = vmatprep.subr.mxu0 0.0
    %169 = vmatpush2.msra.mxu0 0.0
    %170 = vmatprep.subr.mxu0 0.0
    %171 = vmatpush2.msra.mxu0 0.0
    %172 = vmatprep.subr.mxu0 0.0
    %173 = vmatpush2.msra.mxu0 0.0
    %174 = vmatprep.subr.mxu0 0.0
    %175 = vmatpush2.msra.mxu0 0.0
    %176 = vmatprep.subr.mxu0 0.0
    %177 = vmatpush2.msra.mxu0 0.0
    %178 = vmatprep.subr.mxu0 0.0
    %179 = vmatpush2.msra.mxu0 0.0
    %180 = vmatprep.subr.mxu0 0.0
    %181 = vmatpush2.msra.mxu0 0.0
    %182 = vmatprep.subr.mxu0 0.0
    %183 = vmatpush2.msra.mxu0 0.0
    %184 = vmatprep.subr.mxu0 0.0
    %185 = vmatpush2.msra.mxu0 0.0
    %186 = vmatprep.subr.mxu0 0.0
    %187 = vmatpush2.msra.mxu0 0.0
    %188 = vmatprep.subr.mxu0 0.0
    %189 = vmatpush2.msra.mxu0 0.0
    %190 = vmatprep.subr.mxu0 0.0
    %191 = vmatpush2.msra.mxu0 0.0
    %192 = vmatprep.subr.mxu0 0.0
    %193 = vmatpush2.msra.mxu0 0.0
    %194 = vmatprep.mubr.f32.mxu0 0.0
    %195 = vmatmul.mubr.f32.gmra.mxu0 %v107
    %v196 = vpop.f32.mrf.mxu0
    %v197 = vadd.f32 0.0, %v196
    %v198 = vpop.f32.mrf.mxu0
    %199 = vmatprep.mubr.f32.mxu0 0.0
    %200 = vmatmul.mubr.f32.gmra.mxu0 %v110
    %v201 = vpop.f32.mrf.mxu0
    %v202 = vadd.f32 0.0, %v201
    %v203 = vpop.f32.mrf.mxu0
    %204 = vmatprep.mubr.f32.mxu0 0.0
    %205 = vmatmul.mubr.f32.gmra.mxu0 %v113
    %v206 = vpop.f32.mrf.mxu0
    %v207 = vadd.f32 0.0, %v206
    %v208 = vpop.f32.mrf.mxu0
    %209 = vmatprep.mubr.f32.mxu0 0.0
    %210 = vmatmul.mubr.f32.gmra.mxu0 %v116
    %v211 = vpop.f32.mrf.mxu0
    %v212 = vadd.f32 0.0, %v211
    %v213 = vpop.f32.mrf.mxu0
    %214 = vmatprep.mubr.f32.mxu0 0.0
    %215 = vmatmul.mubr.f32.gmra.mxu0 %v119
    %v216 = vpop.f32.mrf.mxu0
    %v217 = vadd.f32 0.0, %v216
    %v218 = vpop.f32.mrf.mxu0
    %219 = vmatprep.mubr.f32.mxu0 0.0
    %220 = vmatmul.mubr.f32.gmra.mxu0 %v122
    %v221 = vpop.f32.mrf.mxu0
    %v222 = vadd.f32 0.0, %v221
    %v223 = vpop.f32.mrf.mxu0
    %224 = vmatprep.mubr.f32.mxu0 0.0
    %225 = vmatmul.mubr.f32.gmra.mxu0 %v125
    %v226 = vpop.f32.mrf.mxu0
    %v227 = vadd.f32 0.0, %v226
    %v228 = vpop.f32.mrf.mxu0
    %229 = vmatprep.mubr.f32.mxu0 0.0
    %230 = vmatmul.mubr.f32.gmra.mxu0 %v128
    %v231 = vpop.f32.mrf.mxu0
    %v232 = vadd.f32 0.0, %v231
    %v233 = vpop.f32.mrf.mxu0
    %234 = vdwg.mxu0
    %v235 = vxor.u32 %v197, 2147483648
    %v236 = vmul.f32 %v235, 1.442695
    %v237 = vpow.pop %v236
    %v238 = vadd.f32 %v237, 1.0
    %v239 = vrcp.pop %v238
    %v240 = vmul.f32 1.0, %v239
    %241 = vrot.lane.b32.xlu0 %v197, 64
    %v242 = vpop.permute.xlu0 %241
    %v243 = vtanh.pop %v242
    %244 = vrot.lane.b32.xlu0 %v240, 32
    %v245 = vpop.permute.xlu0 %244
    %v246 = vmul.f32 %v240, %v243
    %v247 = vtanh.pop %v246
    %v248 = vmul.f32 %v245, %v247
    %vm249 = vcmask 261120
    %v250 = vsel %vm249, %v248, 0.0
    %v252 = vsel %vm105, %v250, 0
    %254 = vmatprep.subr.mxu0 0.0
    %255 = vmatpush1.msra.mxu0 0.0
    %256 = vmatprep.subr.mxu0 0.0
    %257 = vmatpush1.msra.mxu0 0.0
    %258 = vmatprep.subr.mxu0 0.0
    %259 = vmatpush1.msra.mxu0 0.0
    %260 = vmatprep.subr.mxu0 0.0
    %261 = vmatpush1.msra.mxu0 0.0
    %262 = vmatprep.subr.mxu0 0.0
    %263 = vmatpush1.msra.mxu0 0.0
    %264 = vmatprep.subr.mxu0 0.0
    %265 = vmatpush1.msra.mxu0 0.0
    %266 = vmatprep.subr.mxu0 0.0
    %267 = vmatpush1.msra.mxu0 0.0
    %268 = vmatprep.subr.mxu0 0.0
    %269 = vmatpush1.msra.mxu0 0.0
    %270 = vmatprep.subr.mxu0 %v40
    %271 = vmatpush1.msra.mxu0 %v39
    %272 = vmatprep.subr.mxu0 %v38
    %273 = vmatpush1.msra.mxu0 %v37
    %274 = vmatprep.subr.mxu0 %v36
    %275 = vmatpush1.msra.mxu0 %v35
    %276 = vmatprep.subr.mxu0 %v34
    %277 = vmatpush1.msra.mxu0 %v33
    %278 = vmatprep.subr.mxu0 %v32
    %279 = vmatpush1.msra.mxu0 %v31
    %280 = vmatprep.subr.mxu0 %v30
    %281 = vmatpush1.msra.mxu0 %v29
    %282 = vmatprep.subr.mxu0 %v28
    %283 = vmatpush1.msra.mxu0 %v27
    %284 = vmatprep.subr.mxu0 %v26
    %285 = vmatpush1.msra.mxu0 %v25
    %286 = vmatprep.subr.mxu0 0.0
    %287 = vmatpush2.msra.mxu0 0.0
    %288 = vmatprep.subr.mxu0 0.0
    %289 = vmatpush2.msra.mxu0 0.0
    %290 = vmatprep.subr.mxu0 0.0
    %291 = vmatpush2.msra.mxu0 0.0
    %292 = vmatprep.subr.mxu0 0.0
    %293 = vmatpush2.msra.mxu0 0.0
    %294 = vmatprep.subr.mxu0 0.0
    %295 = vmatpush2.msra.mxu0 0.0
    %296 = vmatprep.subr.mxu0 0.0
    %297 = vmatpush2.msra.mxu0 0.0
    %298 = vmatprep.subr.mxu0 0.0
    %299 = vmatpush2.msra.mxu0 0.0
    %300 = vmatprep.subr.mxu0 0.0
    %301 = vmatpush2.msra.mxu0 0.0
    %302 = vmatprep.subr.mxu0 0.0
    %303 = vmatpush2.msra.mxu0 0.0
    %304 = vmatprep.subr.mxu0 0.0
    %305 = vmatpush2.msra.mxu0 0.0
    %306 = vmatprep.subr.mxu0 0.0
    %307 = vmatpush2.msra.mxu0 0.0
    %308 = vmatprep.subr.mxu0 0.0
    %309 = vmatpush2.msra.mxu0 0.0
    %310 = vmatprep.subr.mxu0 0.0
    %311 = vmatpush2.msra.mxu0 0.0
    %312 = vmatprep.subr.mxu0 0.0
    %313 = vmatpush2.msra.mxu0 0.0
    %314 = vmatprep.subr.mxu0 0.0
    %315 = vmatpush2.msra.mxu0 0.0
    %316 = vmatprep.subr.mxu0 0.0
    %317 = vmatpush2.msra.mxu0 0.0
    %318 = vmatprep.mubr.f32.mxu0 0.0
    %319 = vmatmul.mubr.f32.gmra.mxu0 %v252
    %v320 = vpop.f32.mrf.mxu0
    %v321 = vadd.f32 0.0, %v320
    %v322 = vpop.f32.mrf.mxu0
    %v323 = vadd.f32 0.0, %v322
    %324 = vdwg.mxu0
    %v325 = vadd.f32 %v323, %v53
    %v326 = vadd.f32 %v202, %v321
    %v327 = vxor.u32 %v326, 2147483648
    %v328 = vmul.f32 %v327, 1.442695
    %v329 = vpow.pop %v328
    %v330 = vadd.f32 %v329, 1.0
    %v331 = vrcp.pop %v330
    %v332 = vmul.f32 1.0, %v331
    %333 = vrot.lane.b32.xlu0 %v332, 96
    %v334 = vpop.permute.xlu0 %333
    %335 = vrot.lane.b32.xlu0 %v326, 64
    %v336 = vpop.permute.xlu0 %335
    %v337 = vtanh.pop %v336
    %338 = vrot.lane.b32.xlu0 %v332, 32
    %v339 = vpop.permute.xlu0 %338
    %v340 = vmul.f32 %v334, %v246
    %v341 = vmul.f32 %v332, %v337
    %v342 = vadd.f32 %v340, %v341
    %v343 = vtanh.pop %v342
    %v344 = vmul.f32 %v339, %v343
    %v345 = vxor.u32 %v325, 2147483648
    %v346 = vmul.f32 %v345, 1.442695
    %v347 = vpow.pop %v346
    %v348 = vadd.f32 %v347, 1.0
    %v349 = vrcp.pop %v348
    %v350 = vmul.f32 1.0, %v349
    %351 = vrot.lane.b32.xlu0 %v325, 64
    %v352 = vpop.permute.xlu0 %351
    %v353 = vtanh.pop %v352
    %354 = vrot.lane.b32.xlu0 %v350, 32
    %v355 = vpop.permute.xlu0 %354
    %v356 = vmul.f32 %v350, %v353
    %v357 = vtanh.pop %v356
    %v358 = vmul.f32 %v355, %v357
    %360 = vrot.lane.b32.xlu0 %v358, 32
    %v361 = vpop.permute.xlu0 %360
    %v363 = vsel %vm249, %v344, %v361
    %v365 = vsel %vm105, %v363, 0
    %367 = vmatprep.subr.mxu0 0.0
    %368 = vmatpush1.msra.mxu0 0.0
    %369 = vmatprep.subr.mxu0 0.0
    %370 = vmatpush1.msra.mxu0 0.0
    %371 = vmatprep.subr.mxu0 0.0
    %372 = vmatpush1.msra.mxu0 0.0
    %373 = vmatprep.subr.mxu0 0.0
    %374 = vmatpush1.msra.mxu0 0.0
    %375 = vmatprep.subr.mxu0 0.0
    %376 = vmatpush1.msra.mxu0 0.0
    %377 = vmatprep.subr.mxu0 0.0
    %378 = vmatpush1.msra.mxu0 0.0
    %379 = vmatprep.subr.mxu0 0.0
    %380 = vmatpush1.msra.mxu0 0.0
    %381 = vmatprep.subr.mxu0 0.0
    %382 = vmatpush1.msra.mxu0 0.0
    %383 = vmatprep.subr.mxu0 %v40
    %384 = vmatpush1.msra.mxu0 %v39
    %385 = vmatprep.subr.mxu0 %v38
    %386 = vmatpush1.msra.mxu0 %v37
    %387 = vmatprep.subr.mxu0 %v36
    %388 = vmatpush1.msra.mxu0 %v35
    %389 = vmatprep.subr.mxu0 %v34
    %390 = vmatpush1.msra.mxu0 %v33
    %391 = vmatprep.subr.mxu0 %v32
    %392 = vmatpush1.msra.mxu0 %v31
    %393 = vmatprep.subr.mxu0 %v30
    %394 = vmatpush1.msra.mxu0 %v29
    %395 = vmatprep.subr.mxu0 %v28
    %396 = vmatpush1.msra.mxu0 %v27
    %397 = vmatprep.subr.mxu0 %v26
    %398 = vmatpush1.msra.mxu0 %v25
    %399 = vmatprep.subr.mxu0 0.0
    %400 = vmatpush2.msra.mxu0 0.0
    %401 = vmatprep.subr.mxu0 0.0
    %402 = vmatpush2.msra.mxu0 0.0
    %403 = vmatprep.subr.mxu0 0.0
    %404 = vmatpush2.msra.mxu0 0.0
    %405 = vmatprep.subr.mxu0 0.0
    %406 = vmatpush2.msra.mxu0 0.0
    %407 = vmatprep.subr.mxu0 0.0
    %408 = vmatpush2.msra.mxu0 0.0
    %409 = vmatprep.subr.mxu0 0.0
    %410 = vmatpush2.msra.mxu0 0.0
    %411 = vmatprep.subr.mxu0 0.0
    %412 = vmatpush2.msra.mxu0 0.0
    %413 = vmatprep.subr.mxu0 0.0
    %414 = vmatpush2.msra.mxu0 0.0
    %415 = vmatprep.subr.mxu0 0.0
    %416 = vmatpush2.msra.mxu0 0.0
    %417 = vmatprep.subr.mxu0 0.0
    %418 = vmatpush2.msra.mxu0 0.0
    %419 = vmatprep.subr.mxu0 0.0
    %420 = vmatpush2.msra.mxu0 0.0
    %421 = vmatprep.subr.mxu0 0.0
    %422 = vmatpush2.msra.mxu0 0.0
    %423 = vmatprep.subr.mxu0 0.0
    %424 = vmatpush2.msra.mxu0 0.0
    %425 = vmatprep.subr.mxu0 0.0
    %426 = vmatpush2.msra.mxu0 0.0
    %427 = vmatprep.subr.mxu0 0.0
    %428 = vmatpush2.msra.mxu0 0.0
    %429 = vmatprep.subr.mxu0 0.0
    %430 = vmatpush2.msra.mxu0 0.0
    %431 = vmatprep.mubr.f32.mxu0 0.0
    %432 = vmatmul.mubr.f32.gmra.mxu0 %v365
    %v433 = vpop.f32.mrf.mxu0
    %v434 = vadd.f32 0.0, %v433
    %v435 = vpop.f32.mrf.mxu0
    %v436 = vadd.f32 0.0, %v435
    %437 = vdwg.mxu0
    %v438 = vadd.f32 %v436, %v53
    %v439 = vadd.f32 %v207, %v434
    %v440 = vxor.u32 %v439, 2147483648
    %v441 = vmul.f32 %v440, 1.442695
    %v442 = vpow.pop %v441
    %v443 = vadd.f32 %v442, 1.0
    %v444 = vrcp.pop %v443
    %v445 = vmul.f32 1.0, %v444
    %446 = vrot.lane.b32.xlu0 %v445, 96
    %v447 = vpop.permute.xlu0 %446
    %448 = vrot.lane.b32.xlu0 %v439, 64
    %v449 = vpop.permute.xlu0 %448
    %v450 = vtanh.pop %v449
    %451 = vrot.lane.b32.xlu0 %v445, 32
    %v452 = vpop.permute.xlu0 %451
    %v453 = vmul.f32 %v447, %v342
    %v454 = vmul.f32 %v445, %v450
    %v455 = vadd.f32 %v453, %v454
    %v456 = vtanh.pop %v455
    %v457 = vmul.f32 %v452, %v456
    %v458 = vxor.u32 %v438, 2147483648
    %v459 = vmul.f32 %v458, 1.442695
    %v460 = vpow.pop %v459
    %v461 = vadd.f32 %v460, 1.0
    %v462 = vrcp.pop %v461
    %v463 = vmul.f32 1.0, %v462
    %464 = vrot.lane.b32.xlu0 %v463, 96
    %v465 = vpop.permute.xlu0 %464
    %466 = vrot.lane.b32.xlu0 %v438, 64
    %v467 = vpop.permute.xlu0 %466
    %v468 = vtanh.pop %v467
    %469 = vrot.lane.b32.xlu0 %v463, 32
    %v470 = vpop.permute.xlu0 %469
    %v471 = vmul.f32 %v465, %v356
    %v472 = vmul.f32 %v463, %v468
    %v473 = vadd.f32 %v471, %v472
    %v474 = vtanh.pop %v473
    %v475 = vmul.f32 %v470, %v474
    %477 = vrot.lane.b32.xlu0 %v475, 32
    %v478 = vpop.permute.xlu0 %477
    %v480 = vsel %vm249, %v457, %v478
    %v482 = vsel %vm105, %v480, 0
    %484 = vmatprep.subr.mxu0 0.0
    %485 = vmatpush1.msra.mxu0 0.0
    %486 = vmatprep.subr.mxu0 0.0
    %487 = vmatpush1.msra.mxu0 0.0
    %488 = vmatprep.subr.mxu0 0.0
    %489 = vmatpush1.msra.mxu0 0.0
    %490 = vmatprep.subr.mxu0 0.0
    %491 = vmatpush1.msra.mxu0 0.0
    %492 = vmatprep.subr.mxu0 0.0
    %493 = vmatpush1.msra.mxu0 0.0
    %494 = vmatprep.subr.mxu0 0.0
    %495 = vmatpush1.msra.mxu0 0.0
    %496 = vmatprep.subr.mxu0 0.0
    %497 = vmatpush1.msra.mxu0 0.0
    %498 = vmatprep.subr.mxu0 0.0
    %499 = vmatpush1.msra.mxu0 0.0
    %500 = vmatprep.subr.mxu0 %v40
    %501 = vmatpush1.msra.mxu0 %v39
    %502 = vmatprep.subr.mxu0 %v38
    %503 = vmatpush1.msra.mxu0 %v37
    %504 = vmatprep.subr.mxu0 %v36
    %505 = vmatpush1.msra.mxu0 %v35
    %506 = vmatprep.subr.mxu0 %v34
    %507 = vmatpush1.msra.mxu0 %v33
    %508 = vmatprep.subr.mxu0 %v32
    %509 = vmatpush1.msra.mxu0 %v31
    %510 = vmatprep.subr.mxu0 %v30
    %511 = vmatpush1.msra.mxu0 %v29
    %512 = vmatprep.subr.mxu0 %v28
    %513 = vmatpush1.msra.mxu0 %v27
    %514 = vmatprep.subr.mxu0 %v26
    %515 = vmatpush1.msra.mxu0 %v25
    %516 = vmatprep.subr.mxu0 0.0
    %517 = vmatpush2.msra.mxu0 0.0
    %518 = vmatprep.subr.mxu0 0.0
    %519 = vmatpush2.msra.mxu0 0.0
    %520 = vmatprep.subr.mxu0 0.0
    %521 = vmatpush2.msra.mxu0 0.0
    %522 = vmatprep.subr.mxu0 0.0
    %523 = vmatpush2.msra.mxu0 0.0
    %524 = vmatprep.subr.mxu0 0.0
    %525 = vmatpush2.msra.mxu0 0.0
    %526 = vmatprep.subr.mxu0 0.0
    %527 = vmatpush2.msra.mxu0 0.0
    %528 = vmatprep.subr.mxu0 0.0
    %529 = vmatpush2.msra.mxu0 0.0
    %530 = vmatprep.subr.mxu0 0.0
    %531 = vmatpush2.msra.mxu0 0.0
    %532 = vmatprep.subr.mxu0 0.0
    %533 = vmatpush2.msra.mxu0 0.0
    %534 = vmatprep.subr.mxu0 0.0
    %535 = vmatpush2.msra.mxu0 0.0
    %536 = vmatprep.subr.mxu0 0.0
    %537 = vmatpush2.msra.mxu0 0.0
    %538 = vmatprep.subr.mxu0 0.0
    %539 = vmatpush2.msra.mxu0 0.0
    %540 = vmatprep.subr.mxu0 0.0
    %541 = vmatpush2.msra.mxu0 0.0
    %542 = vmatprep.subr.mxu0 0.0
    %543 = vmatpush2.msra.mxu0 0.0
    %544 = vmatprep.subr.mxu0 0.0
    %545 = vmatpush2.msra.mxu0 0.0
    %546 = vmatprep.subr.mxu0 0.0
    %547 = vmatpush2.msra.mxu0 0.0
    %548 = vmatprep.mubr.f32.mxu0 0.0
    %549 = vmatmul.mubr.f32.gmra.mxu0 %v482
    %v550 = vpop.f32.mrf.mxu0
    %v551 = vadd.f32 0.0, %v550
    %v552 = vpop.f32.mrf.mxu0
    %v553 = vadd.f32 0.0, %v552
    %554 = vdwg.mxu0
    %v555 = vadd.f32 %v553, %v53
    %v556 = vadd.f32 %v212, %v551
    %v557 = vxor.u32 %v556, 2147483648
    %v558 = vmul.f32 %v557, 1.442695
    %v559 = vpow.pop %v558
    %v560 = vadd.f32 %v559, 1.0
    %v561 = vrcp.pop %v560
    %v562 = vmul.f32 1.0, %v561
    %563 = vrot.lane.b32.xlu0 %v562, 96
    %v564 = vpop.permute.xlu0 %563
    %565 = vrot.lane.b32.xlu0 %v556, 64
    %v566 = vpop.permute.xlu0 %565
    %v567 = vtanh.pop %v566
    %568 = vrot.lane.b32.xlu0 %v562, 32
    %v569 = vpop.permute.xlu0 %568
    %v570 = vmul.f32 %v564, %v455
    %v571 = vmul.f32 %v562, %v567
    %v572 = vadd.f32 %v570, %v571
    %v573 = vtanh.pop %v572
    %v574 = vmul.f32 %v569, %v573
    %v575 = vxor.u32 %v555, 2147483648
    %v576 = vmul.f32 %v575, 1.442695
    %v577 = vpow.pop %v576
    %v578 = vadd.f32 %v577, 1.0
    %v579 = vrcp.pop %v578
    %v580 = vmul.f32 1.0, %v579
    %581 = vrot.lane.b32.xlu0 %v580, 96
    %v582 = vpop.permute.xlu0 %581
    %583 = vrot.lane.b32.xlu0 %v555, 64
    %v584 = vpop.permute.xlu0 %583
    %v585 = vtanh.pop %v584
    %586 = vrot.lane.b32.xlu0 %v580, 32
    %v587 = vpop.permute.xlu0 %586
    %v588 = vmul.f32 %v582, %v473
    %v589 = vmul.f32 %v580, %v585
    %v590 = vadd.f32 %v588, %v589
    %v591 = vtanh.pop %v590
    %v592 = vmul.f32 %v587, %v591
    %594 = vrot.lane.b32.xlu0 %v592, 32
    %v595 = vpop.permute.xlu0 %594
    %v597 = vsel %vm249, %v574, %v595
    %v599 = vsel %vm105, %v597, 0
    %601 = vmatprep.subr.mxu0 0.0
    %602 = vmatpush1.msra.mxu0 0.0
    %603 = vmatprep.subr.mxu0 0.0
    %604 = vmatpush1.msra.mxu0 0.0
    %605 = vmatprep.subr.mxu0 0.0
    %606 = vmatpush1.msra.mxu0 0.0
    %607 = vmatprep.subr.mxu0 0.0
    %608 = vmatpush1.msra.mxu0 0.0
    %609 = vmatprep.subr.mxu0 0.0
    %610 = vmatpush1.msra.mxu0 0.0
    %611 = vmatprep.subr.mxu0 0.0
    %612 = vmatpush1.msra.mxu0 0.0
    %613 = vmatprep.subr.mxu0 0.0
    %614 = vmatpush1.msra.mxu0 0.0
    %615 = vmatprep.subr.mxu0 0.0
    %616 = vmatpush1.msra.mxu0 0.0
    %617 = vmatprep.subr.mxu0 %v40
    %618 = vmatpush1.msra.mxu0 %v39
    %619 = vmatprep.subr.mxu0 %v38
    %620 = vmatpush1.msra.mxu0 %v37
    %621 = vmatprep.subr.mxu0 %v36
    %622 = vmatpush1.msra.mxu0 %v35
    %623 = vmatprep.subr.mxu0 %v34
    %624 = vmatpush1.msra.mxu0 %v33
    %625 = vmatprep.subr.mxu0 %v32
    %626 = vmatpush1.msra.mxu0 %v31
    %627 = vmatprep.subr.mxu0 %v30
    %628 = vmatpush1.msra.mxu0 %v29
    %629 = vmatprep.subr.mxu0 %v28
    %630 = vmatpush1.msra.mxu0 %v27
    %631 = vmatprep.subr.mxu0 %v26
    %632 = vmatpush1.msra.mxu0 %v25
    %633 = vmatprep.subr.mxu0 0.0
    %634 = vmatpush2.msra.mxu0 0.0
    %635 = vmatprep.subr.mxu0 0.0
    %636 = vmatpush2.msra.mxu0 0.0
    %637 = vmatprep.subr.mxu0 0.0
    %638 = vmatpush2.msra.mxu0 0.0
    %639 = vmatprep.subr.mxu0 0.0
    %640 = vmatpush2.msra.mxu0 0.0
    %641 = vmatprep.subr.mxu0 0.0
    %642 = vmatpush2.msra.mxu0 0.0
    %643 = vmatprep.subr.mxu0 0.0
    %644 = vmatpush2.msra.mxu0 0.0
    %645 = vmatprep.subr.mxu0 0.0
    %646 = vmatpush2.msra.mxu0 0.0
    %647 = vmatprep.subr.mxu0 0.0
    %648 = vmatpush2.msra.mxu0 0.0
    %649 = vmatprep.subr.mxu0 0.0
    %650 = vmatpush2.msra.mxu0 0.0
    %651 = vmatprep.subr.mxu0 0.0
    %652 = vmatpush2.msra.mxu0 0.0
    %653 = vmatprep.subr.mxu0 0.0
    %654 = vmatpush2.msra.mxu0 0.0
    %655 = vmatprep.subr.mxu0 0.0
    %656 = vmatpush2.msra.mxu0 0.0
    %657 = vmatprep.subr.mxu0 0.0
    %658 = vmatpush2.msra.mxu0 0.0
    %659 = vmatprep.subr.mxu0 0.0
    %660 = vmatpush2.msra.mxu0 0.0
    %661 = vmatprep.subr.mxu0 0.0
    %662 = vmatpush2.msra.mxu0 0.0
    %663 = vmatprep.subr.mxu0 0.0
    %664 = vmatpush2.msra.mxu0 0.0
    %665 = vmatprep.mubr.f32.mxu0 0.0
    %666 = vmatmul.mubr.f32.gmra.mxu0 %v599
    %v667 = vpop.f32.mrf.mxu0
    %v668 = vadd.f32 0.0, %v667
    %v669 = vpop.f32.mrf.mxu0
    %v670 = vadd.f32 0.0, %v669
    %671 = vdwg.mxu0
    %v672 = vadd.f32 %v670, %v53
    %v673 = vadd.f32 %v217, %v668
    %v674 = vxor.u32 %v673, 2147483648
    %v675 = vmul.f32 %v674, 1.442695
    %v676 = vpow.pop %v675
    %v677 = vadd.f32 %v676, 1.0
    %v678 = vrcp.pop %v677
    %v679 = vmul.f32 1.0, %v678
    %680 = vrot.lane.b32.xlu0 %v679, 96
    %v681 = vpop.permute.xlu0 %680
    %682 = vrot.lane.b32.xlu0 %v673, 64
    %v683 = vpop.permute.xlu0 %682
    %v684 = vtanh.pop %v683
    %685 = vrot.lane.b32.xlu0 %v679, 32
    %v686 = vpop.permute.xlu0 %685
    %v687 = vmul.f32 %v681, %v572
    %v688 = vmul.f32 %v679, %v684
    %v689 = vadd.f32 %v687, %v688
    %v690 = vtanh.pop %v689
    %v691 = vmul.f32 %v686, %v690
    %v692 = vxor.u32 %v672, 2147483648
    %v693 = vmul.f32 %v692, 1.442695
    %v694 = vpow.pop %v693
    %v695 = vadd.f32 %v694, 1.0
    %v696 = vrcp.pop %v695
    %v697 = vmul.f32 1.0, %v696
    %698 = vrot.lane.b32.xlu0 %v697, 96
    %v699 = vpop.permute.xlu0 %698
    %700 = vrot.lane.b32.xlu0 %v672, 64
    %v701 = vpop.permute.xlu0 %700
    %v702 = vtanh.pop %v701
    %703 = vrot.lane.b32.xlu0 %v697, 32
    %v704 = vpop.permute.xlu0 %703
    %v705 = vmul.f32 %v699, %v590
    %v706 = vmul.f32 %v697, %v702
    %v707 = vadd.f32 %v705, %v706
    %v708 = vtanh.pop %v707
    %v709 = vmul.f32 %v704, %v708
    %711 = vrot.lane.b32.xlu0 %v709, 32
    %v712 = vpop.permute.xlu0 %711
    %v714 = vsel %vm249, %v691, %v712
    %v716 = vsel %vm105, %v714, 0
    %718 = vmatprep.subr.mxu0 0.0
    %719 = vmatpush1.msra.mxu0 0.0
    %720 = vmatprep.subr.mxu0 0.0
    %721 = vmatpush1.msra.mxu0 0.0
    %722 = vmatprep.subr.mxu0 0.0
    %723 = vmatpush1.msra.mxu0 0.0
    %724 = vmatprep.subr.mxu0 0.0
    %725 = vmatpush1.msra.mxu0 0.0
    %726 = vmatprep.subr.mxu0 0.0
    %727 = vmatpush1.msra.mxu0 0.0
    %728 = vmatprep.subr.mxu0 0.0
    %729 = vmatpush1.msra.mxu0 0.0
    %730 = vmatprep.subr.mxu0 0.0
    %731 = vmatpush1.msra.mxu0 0.0
    %732 = vmatprep.subr.mxu0 0.0
    %733 = vmatpush1.msra.mxu0 0.0
    %734 = vmatprep.subr.mxu0 %v40
    %735 = vmatpush1.msra.mxu0 %v39
    %736 = vmatprep.subr.mxu0 %v38
    %737 = vmatpush1.msra.mxu0 %v37
    %738 = vmatprep.subr.mxu0 %v36
    %739 = vmatpush1.msra.mxu0 %v35
    %740 = vmatprep.subr.mxu0 %v34
    %741 = vmatpush1.msra.mxu0 %v33
    %742 = vmatprep.subr.mxu0 %v32
    %743 = vmatpush1.msra.mxu0 %v31
    %744 = vmatprep.subr.mxu0 %v30
    %745 = vmatpush1.msra.mxu0 %v29
    %746 = vmatprep.subr.mxu0 %v28
    %747 = vmatpush1.msra.mxu0 %v27
    %748 = vmatprep.subr.mxu0 %v26
    %749 = vmatpush1.msra.mxu0 %v25
    %750 = vmatprep.subr.mxu0 0.0
    %751 = vmatpush2.msra.mxu0 0.0
    %752 = vmatprep.subr.mxu0 0.0
    %753 = vmatpush2.msra.mxu0 0.0
    %754 = vmatprep.subr.mxu0 0.0
    %755 = vmatpush2.msra.mxu0 0.0
    %756 = vmatprep.subr.mxu0 0.0
    %757 = vmatpush2.msra.mxu0 0.0
    %758 = vmatprep.subr.mxu0 0.0
    %759 = vmatpush2.msra.mxu0 0.0
    %760 = vmatprep.subr.mxu0 0.0
    %761 = vmatpush2.msra.mxu0 0.0
    %762 = vmatprep.subr.mxu0 0.0
    %763 = vmatpush2.msra.mxu0 0.0
    %764 = vmatprep.subr.mxu0 0.0
    %765 = vmatpush2.msra.mxu0 0.0
    %766 = vmatprep.subr.mxu0 0.0
    %767 = vmatpush2.msra.mxu0 0.0
    %768 = vmatprep.subr.mxu0 0.0
    %769 = vmatpush2.msra.mxu0 0.0
    %770 = vmatprep.subr.mxu0 0.0
    %771 = vmatpush2.msra.mxu0 0.0
    %772 = vmatprep.subr.mxu0 0.0
    %773 = vmatpush2.msra.mxu0 0.0
    %774 = vmatprep.subr.mxu0 0.0
    %775 = vmatpush2.msra.mxu0 0.0
    %776 = vmatprep.subr.mxu0 0.0
    %777 = vmatpush2.msra.mxu0 0.0
    %778 = vmatprep.subr.mxu0 0.0
    %779 = vmatpush2.msra.mxu0 0.0
    %780 = vmatprep.subr.mxu0 0.0
    %781 = vmatpush2.msra.mxu0 0.0
    %782 = vmatprep.mubr.f32.mxu0 0.0
    %783 = vmatmul.mubr.f32.gmra.mxu0 %v716
    %v784 = vpop.f32.mrf.mxu0
    %v785 = vadd.f32 0.0, %v784
    %v786 = vpop.f32.mrf.mxu0
    %v787 = vadd.f32 0.0, %v786
    %788 = vdwg.mxu0
    %v789 = vadd.f32 %v787, %v53
    %v790 = vadd.f32 %v222, %v785
    %v791 = vxor.u32 %v790, 2147483648
    %v792 = vmul.f32 %v791, 1.442695
    %v793 = vpow.pop %v792
    %v794 = vadd.f32 %v793, 1.0
    %v795 = vrcp.pop %v794
    %v796 = vmul.f32 1.0, %v795
    %797 = vrot.lane.b32.xlu0 %v796, 96
    %v798 = vpop.permute.xlu0 %797
    %799 = vrot.lane.b32.xlu0 %v790, 64
    %v800 = vpop.permute.xlu0 %799
    %v801 = vtanh.pop %v800
    %802 = vrot.lane.b32.xlu0 %v796, 32
    %v803 = vpop.permute.xlu0 %802
    %v804 = vmul.f32 %v798, %v689
    %v805 = vmul.f32 %v796, %v801
    %v806 = vadd.f32 %v804, %v805
    %v807 = vtanh.pop %v806
    %v808 = vmul.f32 %v803, %v807
    %v809 = vxor.u32 %v789, 2147483648
    %v810 = vmul.f32 %v809, 1.442695
    %v811 = vpow.pop %v810
    %v812 = vadd.f32 %v811, 1.0
    %v813 = vrcp.pop %v812
    %v814 = vmul.f32 1.0, %v813
    %815 = vrot.lane.b32.xlu0 %v814, 96
    %v816 = vpop.permute.xlu0 %815
    %817 = vrot.lane.b32.xlu0 %v789, 64
    %v818 = vpop.permute.xlu0 %817
    %v819 = vtanh.pop %v818
    %820 = vrot.lane.b32.xlu0 %v814, 32
    %v821 = vpop.permute.xlu0 %820
    %v822 = vmul.f32 %v816, %v707
    %v823 = vmul.f32 %v814, %v819
    %v824 = vadd.f32 %v822, %v823
    %v825 = vtanh.pop %v824
    %v826 = vmul.f32 %v821, %v825
    %828 = vrot.lane.b32.xlu0 %v826, 32
    %v829 = vpop.permute.xlu0 %828
    %v831 = vsel %vm249, %v808, %v829
    %v833 = vsel %vm105, %v831, 0
    %835 = vmatprep.subr.mxu0 0.0
    %836 = vmatpush1.msra.mxu0 0.0
    %837 = vmatprep.subr.mxu0 0.0
    %838 = vmatpush1.msra.mxu0 0.0
    %839 = vmatprep.subr.mxu0 0.0
    %840 = vmatpush1.msra.mxu0 0.0
    %841 = vmatprep.subr.mxu0 0.0
    %842 = vmatpush1.msra.mxu0 0.0
    %843 = vmatprep.subr.mxu0 0.0
    %844 = vmatpush1.msra.mxu0 0.0
    %845 = vmatprep.subr.mxu0 0.0
    %846 = vmatpush1.msra.mxu0 0.0
    %847 = vmatprep.subr.mxu0 0.0
    %848 = vmatpush1.msra.mxu0 0.0
    %849 = vmatprep.subr.mxu0 0.0
    %850 = vmatpush1.msra.mxu0 0.0
    %851 = vmatprep.subr.mxu0 %v40
    %852 = vmatpush1.msra.mxu0 %v39
    %853 = vmatprep.subr.mxu0 %v38
    %854 = vmatpush1.msra.mxu0 %v37
    %855 = vmatprep.subr.mxu0 %v36
    %856 = vmatpush1.msra.mxu0 %v35
    %857 = vmatprep.subr.mxu0 %v34
    %858 = vmatpush1.msra.mxu0 %v33
    %859 = vmatprep.subr.mxu0 %v32
    %860 = vmatpush1.msra.mxu0 %v31
    %861 = vmatprep.subr.mxu0 %v30
    %862 = vmatpush1.msra.mxu0 %v29
    %863 = vmatprep.subr.mxu0 %v28
    %864 = vmatpush1.msra.mxu0 %v27
    %865 = vmatprep.subr.mxu0 %v26
    %866 = vmatpush1.msra.mxu0 %v25
    %867 = vmatprep.subr.mxu0 0.0
    %868 = vmatpush2.msra.mxu0 0.0
    %869 = vmatprep.subr.mxu0 0.0
    %870 = vmatpush2.msra.mxu0 0.0
    %871 = vmatprep.subr.mxu0 0.0
    %872 = vmatpush2.msra.mxu0 0.0
    %873 = vmatprep.subr.mxu0 0.0
    %874 = vmatpush2.msra.mxu0 0.0
    %875 = vmatprep.subr.mxu0 0.0
    %876 = vmatpush2.msra.mxu0 0.0
    %877 = vmatprep.subr.mxu0 0.0
    %878 = vmatpush2.msra.mxu0 0.0
    %879 = vmatprep.subr.mxu0 0.0
    %880 = vmatpush2.msra.mxu0 0.0
    %881 = vmatprep.subr.mxu0 0.0
    %882 = vmatpush2.msra.mxu0 0.0
    %883 = vmatprep.subr.mxu0 0.0
    %884 = vmatpush2.msra.mxu0 0.0
    %885 = vmatprep.subr.mxu0 0.0
    %886 = vmatpush2.msra.mxu0 0.0
    %887 = vmatprep.subr.mxu0 0.0
    %888 = vmatpush2.msra.mxu0 0.0
    %889 = vmatprep.subr.mxu0 0.0
    %890 = vmatpush2.msra.mxu0 0.0
    %891 = vmatprep.subr.mxu0 0.0
    %892 = vmatpush2.msra.mxu0 0.0
    %893 = vmatprep.subr.mxu0 0.0
    %894 = vmatpush2.msra.mxu0 0.0
    %895 = vmatprep.subr.mxu0 0.0
    %896 = vmatpush2.msra.mxu0 0.0
    %897 = vmatprep.subr.mxu0 0.0
    %898 = vmatpush2.msra.mxu0 0.0
    %899 = vmatprep.mubr.f32.mxu0 0.0
    %900 = vmatmul.mubr.f32.gmra.mxu0 %v833
    %v901 = vpop.f32.mrf.mxu0
    %v902 = vadd.f32 0.0, %v901
    %v903 = vpop.f32.mrf.mxu0
    %v904 = vadd.f32 0.0, %v903
    %905 = vdwg.mxu0
    %v906 = vadd.f32 %v904, %v53
    %v907 = vadd.f32 %v227, %v902
    %v908 = vxor.u32 %v907, 2147483648
    %v909 = vmul.f32 %v908, 1.442695
    %v910 = vpow.pop %v909
    %v911 = vadd.f32 %v910, 1.0
    %v912 = vrcp.pop %v911
    %v913 = vmul.f32 1.0, %v912
    %914 = vrot.lane.b32.xlu0 %v913, 96
    %v915 = vpop.permute.xlu0 %914
    %916 = vrot.lane.b32.xlu0 %v907, 64
    %v917 = vpop.permute.xlu0 %916
    %v918 = vtanh.pop %v917
    %919 = vrot.lane.b32.xlu0 %v913, 32
    %v920 = vpop.permute.xlu0 %919
    %v921 = vmul.f32 %v915, %v806
    %v922 = vmul.f32 %v913, %v918
    %v923 = vadd.f32 %v921, %v922
    %v924 = vtanh.pop %v923
    %v925 = vmul.f32 %v920, %v924
    %v926 = vxor.u32 %v906, 2147483648
    %v927 = vmul.f32 %v926, 1.442695
    %v928 = vpow.pop %v927
    %v929 = vadd.f32 %v928, 1.0
    %v930 = vrcp.pop %v929
    %v931 = vmul.f32 1.0, %v930
    %932 = vrot.lane.b32.xlu0 %v931, 96
    %v933 = vpop.permute.xlu0 %932
    %934 = vrot.lane.b32.xlu0 %v906, 64
    %v935 = vpop.permute.xlu0 %934
    %v936 = vtanh.pop %v935
    %937 = vrot.lane.b32.xlu0 %v931, 32
    %v938 = vpop.permute.xlu0 %937
    %v939 = vmul.f32 %v933, %v824
    %v940 = vmul.f32 %v931, %v936
    %v941 = vadd.f32 %v939, %v940
    %v942 = vtanh.pop %v941
    %v943 = vmul.f32 %v938, %v942
    %945 = vrot.lane.b32.xlu0 %v943, 32
    %v946 = vpop.permute.xlu0 %945
    %v948 = vsel %vm249, %v925, %v946
    %v950 = vsel %vm105, %v948, 0
    %952 = vmatprep.subr.mxu0 0.0
    %953 = vmatpush1.msra.mxu0 0.0
    %954 = vmatprep.subr.mxu0 0.0
    %955 = vmatpush1.msra.mxu0 0.0
    %956 = vmatprep.subr.mxu0 0.0
    %957 = vmatpush1.msra.mxu0 0.0
    %958 = vmatprep.subr.mxu0 0.0
    %959 = vmatpush1.msra.mxu0 0.0
    %960 = vmatprep.subr.mxu0 0.0
    %961 = vmatpush1.msra.mxu0 0.0
    %962 = vmatprep.subr.mxu0 0.0
    %963 = vmatpush1.msra.mxu0 0.0
    %964 = vmatprep.subr.mxu0 0.0
    %965 = vmatpush1.msra.mxu0 0.0
    %966 = vmatprep.subr.mxu0 0.0
    %967 = vmatpush1.msra.mxu0 0.0
    %968 = vmatprep.subr.mxu0 %v40
    %969 = vmatpush1.msra.mxu0 %v39
    %970 = vmatprep.subr.mxu0 %v38
    %971 = vmatpush1.msra.mxu0 %v37
    %972 = vmatprep.subr.mxu0 %v36
    %973 = vmatpush1.msra.mxu0 %v35
    %974 = vmatprep.subr.mxu0 %v34
    %975 = vmatpush1.msra.mxu0 %v33
    %976 = vmatprep.subr.mxu0 %v32
    %977 = vmatpush1.msra.mxu0 %v31
    %978 = vmatprep.subr.mxu0 %v30
    %979 = vmatpush1.msra.mxu0 %v29
    %980 = vmatprep.subr.mxu0 %v28
    %981 = vmatpush1.msra.mxu0 %v27
    %982 = vmatprep.subr.mxu0 %v26
    %983 = vmatpush1.msra.mxu0 %v25
    %984 = vmatprep.subr.mxu0 0.0
    %985 = vmatpush2.msra.mxu0 0.0
    %986 = vmatprep.subr.mxu0 0.0
    %987 = vmatpush2.msra.mxu0 0.0
    %988 = vmatprep.subr.mxu0 0.0
    %989 = vmatpush2.msra.mxu0 0.0
    %990 = vmatprep.subr.mxu0 0.0
    %991 = vmatpush2.msra.mxu0 0.0
    %992 = vmatprep.subr.mxu0 0.0
    %993 = vmatpush2.msra.mxu0 0.0
    %994 = vmatprep.subr.mxu0 0.0
    %995 = vmatpush2.msra.mxu0 0.0
    %996 = vmatprep.subr.mxu0 0.0
    %997 = vmatpush2.msra.mxu0 0.0
    %998 = vmatprep.subr.mxu0 0.0
    %999 = vmatpush2.msra.mxu0 0.0
    %1000 = vmatprep.subr.mxu0 0.0
    %1001 = vmatpush2.msra.mxu0 0.0
    %1002 = vmatprep.subr.mxu0 0.0
    %1003 = vmatpush2.msra.mxu0 0.0
    %1004 = vmatprep.subr.mxu0 0.0
    %1005 = vmatpush2.msra.mxu0 0.0
    %1006 = vmatprep.subr.mxu0 0.0
    %1007 = vmatpush2.msra.mxu0 0.0
    %1008 = vmatprep.subr.mxu0 0.0
    %1009 = vmatpush2.msra.mxu0 0.0
    %1010 = vmatprep.subr.mxu0 0.0
    %1011 = vmatpush2.msra.mxu0 0.0
    %1012 = vmatprep.subr.mxu0 0.0
    %1013 = vmatpush2.msra.mxu0 0.0
    %1014 = vmatprep.subr.mxu0 0.0
    %1015 = vmatpush2.msra.mxu0 0.0
    %1016 = vmatprep.mubr.f32.mxu0 0.0
    %1017 = vmatmul.mubr.f32.gmra.mxu0 %v950
    %v1018 = vpop.f32.mrf.mxu0
    %v1019 = vadd.f32 0.0, %v1018
    %v1020 = vpop.f32.mrf.mxu0
    %v1021 = vadd.f32 0.0, %v1020
    %1022 = vdwg.mxu0
    %v1023 = vadd.f32 %v1021, %v53
    %v1024 = vadd.f32 %v232, %v1019
    %v1025 = vxor.u32 %v1024, 2147483648
    %v1026 = vmul.f32 %v1025, 1.442695
    %v1027 = vpow.pop %v1026
    %v1028 = vadd.f32 %v1027, 1.0
    %v1029 = vrcp.pop %v1028
    %v1030 = vmul.f32 1.0, %v1029
    %1031 = vrot.lane.b32.xlu0 %v1030, 96
    %v1032 = vpop.permute.xlu0 %1031
    %1033 = vrot.lane.b32.xlu0 %v1024, 64
    %v1034 = vpop.permute.xlu0 %1033
    %v1035 = vtanh.pop %v1034
    %1036 = vrot.lane.b32.xlu0 %v1030, 32
    %v1037 = vpop.permute.xlu0 %1036
    %v1038 = vmul.f32 %v1032, %v923
    %v1039 = vmul.f32 %v1030, %v1035
    %v1040 = vadd.f32 %v1038, %v1039
    %v1041 = vtanh.pop %v1040
    %v1042 = vmul.f32 %v1037, %v1041
    %v1043 = vxor.u32 %v1023, 2147483648
    %v1044 = vmul.f32 %v1043, 1.442695
    %v1045 = vpow.pop %v1044
    %v1046 = vadd.f32 %v1045, 1.0
    %v1047 = vrcp.pop %v1046
    %v1048 = vmul.f32 1.0, %v1047
    %1049 = vrot.lane.b32.xlu0 %v1048, 96
    %v1050 = vpop.permute.xlu0 %1049
    %1051 = vrot.lane.b32.xlu0 %v1023, 64
    %v1052 = vpop.permute.xlu0 %1051
    %v1053 = vtanh.pop %v1052
    %1054 = vrot.lane.b32.xlu0 %v1048, 32
    %v1055 = vpop.permute.xlu0 %1054
    %v1056 = vmul.f32 %v1050, %v941
    %v1057 = vmul.f32 %v1048, %v1053
    %v1058 = vadd.f32 %v1056, %v1057
    %v1059 = vtanh.pop %v1058
    %v1060 = vmul.f32 %v1055, %v1059
    %1062 = vrot.lane.b32.xlu0 %v1060, 32
    %v1063 = vpop.permute.xlu0 %1062
    %v1065 = vsel %vm249, %v1042, %v1063
    %v1067 = vsel %vm105, %v1065, 0
    %1069 = vmatprep.subr.mxu0 0.0
    %1070 = vmatpush1.msra.mxu0 0.0
    %1071 = vmatprep.subr.mxu0 0.0
    %1072 = vmatpush1.msra.mxu0 0.0
    %1073 = vmatprep.subr.mxu0 0.0
    %1074 = vmatpush1.msra.mxu0 0.0
    %1075 = vmatprep.subr.mxu0 0.0
    %1076 = vmatpush1.msra.mxu0 0.0
    %1077 = vmatprep.subr.mxu0 0.0
    %1078 = vmatpush1.msra.mxu0 0.0
    %1079 = vmatprep.subr.mxu0 0.0
    %1080 = vmatpush1.msra.mxu0 0.0
    %1081 = vmatprep.subr.mxu0 0.0
    %1082 = vmatpush1.msra.mxu0 0.0
    %1083 = vmatprep.subr.mxu0 0.0
    %1084 = vmatpush1.msra.mxu0 0.0
    %1085 = vmatprep.subr.mxu0 %v40
    %1086 = vmatpush1.msra.mxu0 %v39
    %1087 = vmatprep.subr.mxu0 %v38
    %1088 = vmatpush1.msra.mxu0 %v37
    %1089 = vmatprep.subr.mxu0 %v36
    %1090 = vmatpush1.msra.mxu0 %v35
    %1091 = vmatprep.subr.mxu0 %v34
    %1092 = vmatpush1.msra.mxu0 %v33
    %1093 = vmatprep.subr.mxu0 %v32
    %1094 = vmatpush1.msra.mxu0 %v31
    %1095 = vmatprep.subr.mxu0 %v30
    %1096 = vmatpush1.msra.mxu0 %v29
    %1097 = vmatprep.subr.mxu0 %v28
    %1098 = vmatpush1.msra.mxu0 %v27
    %1099 = vmatprep.subr.mxu0 %v26
    %1100 = vmatpush1.msra.mxu0 %v25
    %1101 = vmatprep.subr.mxu0 0.0
    %1102 = vmatpush2.msra.mxu0 0.0
    %1103 = vmatprep.subr.mxu0 0.0
    %1104 = vmatpush2.msra.mxu0 0.0
    %1105 = vmatprep.subr.mxu0 0.0
    %1106 = vmatpush2.msra.mxu0 0.0
    %1107 = vmatprep.subr.mxu0 0.0
    %1108 = vmatpush2.msra.mxu0 0.0
    %1109 = vmatprep.subr.mxu0 0.0
    %1110 = vmatpush2.msra.mxu0 0.0
    %1111 = vmatprep.subr.mxu0 0.0
    %1112 = vmatpush2.msra.mxu0 0.0
    %1113 = vmatprep.subr.mxu0 0.0
    %1114 = vmatpush2.msra.mxu0 0.0
    %1115 = vmatprep.subr.mxu0 0.0
    %1116 = vmatpush2.msra.mxu0 0.0
    %1117 = vmatprep.subr.mxu0 0.0
    %1118 = vmatpush2.msra.mxu0 0.0
    %1119 = vmatprep.subr.mxu0 0.0
    %1120 = vmatpush2.msra.mxu0 0.0
    %1121 = vmatprep.subr.mxu0 0.0
    %1122 = vmatpush2.msra.mxu0 0.0
    %1123 = vmatprep.subr.mxu0 0.0
    %1124 = vmatpush2.msra.mxu0 0.0
    %1125 = vmatprep.subr.mxu0 0.0
    %1126 = vmatpush2.msra.mxu0 0.0
    %1127 = vmatprep.subr.mxu0 0.0
    %1128 = vmatpush2.msra.mxu0 0.0
    %1129 = vmatprep.subr.mxu0 0.0
    %1130 = vmatpush2.msra.mxu0 0.0
    %1131 = vmatprep.subr.mxu0 0.0
    %1132 = vmatpush2.msra.mxu0 0.0
    %1133 = vmatprep.mubr.f32.mxu0 0.0
    %1134 = vmatmul.mubr.f32.gmra.mxu0 %v1067
    %v1135 = vpop.f32.mrf.mxu0
    %v1136 = vpop.f32.mrf.mxu0
    %v1137 = vadd.f32 0.0, %v1136
    %1138 = vdwg.mxu0
    %v1139 = vadd.f32 %v1137, %v53
    %v1140 = vxor.u32 %v1139, 2147483648
    %v1141 = vmul.f32 %v1140, 1.442695
    %v1142 = vpow.pop %v1141
    %v1143 = vadd.f32 %v1142, 1.0
    %v1144 = vrcp.pop %v1143
    %v1145 = vmul.f32 1.0, %v1144
    %1146 = vrot.lane.b32.xlu0 %v1145, 96
    %v1147 = vpop.permute.xlu0 %1146
    %1148 = vrot.lane.b32.xlu0 %v1139, 64
    %v1149 = vpop.permute.xlu0 %1148
    %v1150 = vtanh.pop %v1149
    %1151 = vrot.lane.b32.xlu0 %v1145, 32
    %v1152 = vpop.permute.xlu0 %1151
    %v1153 = vmul.f32 %v1147, %v1058
    %v1154 = vmul.f32 %v1145, %v1150
    %v1155 = vadd.f32 %v1153, %v1154
    %v1156 = vtanh.pop %v1155
    %v1157 = vmul.f32 %v1152, %v1156
    %v1159 = vsel %vm249, %v1157, 0
    %1161 = vmatprep.subr.mxu0 0.0
    %1162 = vmatpush1.msra.mxu0 0.0
    %1163 = vmatprep.subr.mxu0 0.0
    %1164 = vmatpush1.msra.mxu0 0.0
    %1165 = vmatprep.subr.mxu0 0.0
    %1166 = vmatpush1.msra.mxu0 0.0
    %1167 = vmatprep.subr.mxu0 0.0
    %1168 = vmatpush1.msra.mxu0 0.0
    %1169 = vmatprep.subr.mxu0 0.0
    %1170 = vmatpush1.msra.mxu0 0.0
    %1171 = vmatprep.subr.mxu0 0.0
    %1172 = vmatpush1.msra.mxu0 0.0
    %1173 = vmatprep.subr.mxu0 0.0
    %1174 = vmatpush1.msra.mxu0 0.0
    %1175 = vmatprep.subr.mxu0 0.0
    %1176 = vmatpush1.msra.mxu0 0.0
    %1177 = vmatprep.subr.mxu0 0.0
    %1178 = vmatpush1.msra.mxu0 0.0
    %1179 = vmatprep.subr.mxu0 0.0
    %1180 = vmatpush1.msra.mxu0 0.0
    %1181 = vmatprep.subr.mxu0 0.0
    %1182 = vmatpush1.msra.mxu0 0.0
    %1183 = vmatprep.subr.mxu0 0.0
    %1184 = vmatpush1.msra.mxu0 0.0
    %1185 = vmatprep.subr.mxu0 0.0
    %1186 = vmatpush1.msra.mxu0 %v52
    %1187 = vmatprep.subr.mxu0 0.0
    %1188 = vmatpush1.msra.mxu0 %v51
    %1189 = vmatprep.subr.mxu0 0.0
    %1190 = vmatpush1.msra.mxu0 %v50
    %1191 = vmatprep.subr.mxu0 0.0
    %1192 = vmatpush1.msra.mxu0 %v49
    %1193 = vmatprep.subr.mxu0 0.0
    %1194 = vmatpush2.msra.mxu0 0.0
    %1195 = vmatprep.subr.mxu0 0.0
    %1196 = vmatpush2.msra.mxu0 0.0
    %1197 = vmatprep.subr.mxu0 0.0
    %1198 = vmatpush2.msra.mxu0 0.0
    %1199 = vmatprep.subr.mxu0 0.0
    %1200 = vmatpush2.msra.mxu0 0.0
    %1201 = vmatprep.subr.mxu0 0.0
    %1202 = vmatpush2.msra.mxu0 0.0
    %1203 = vmatprep.subr.mxu0 0.0
    %1204 = vmatpush2.msra.mxu0 0.0
    %1205 = vmatprep.subr.mxu0 0.0
    %1206 = vmatpush2.msra.mxu0 0.0
    %1207 = vmatprep.subr.mxu0 0.0
    %1208 = vmatpush2.msra.mxu0 0.0
    %1209 = vmatprep.subr.mxu0 0.0
    %1210 = vmatpush2.msra.mxu0 0.0
    %1211 = vmatprep.subr.mxu0 0.0
    %1212 = vmatpush2.msra.mxu0 0.0
    %1213 = vmatprep.subr.mxu0 0.0
    %1214 = vmatpush2.msra.mxu0 0.0
    %1215 = vmatprep.subr.mxu0 0.0
    %1216 = vmatpush2.msra.mxu0 0.0
    %1217 = vmatprep.subr.mxu0 0.0
    %1218 = vmatpush2.msra.mxu0 0.0
    %1219 = vmatprep.subr.mxu0 0.0
    %1220 = vmatpush2.msra.mxu0 0.0
    %1221 = vmatprep.subr.mxu0 0.0
    %1222 = vmatpush2.msra.mxu0 0.0
    %1223 = vmatprep.subr.mxu0 0.0
    %1224 = vmatpush2.msra.mxu0 0.0
    %1225 = vmatprep.mubr.f32.mxu0 0.0
    %1226 = vmatmul.mubr.f32.gmra.mxu0 %v1159
    %v1227 = vpop.f32.mrf.mxu0
    %v1228 = vadd.f32 %v54, %v1227
    %v1229 = vpop.f32.mrf.mxu0
    %1230 = vdwg.mxu0
    %vm1231 = vcmask 31744
    %1232 = vst.msk [vmem:[%s2] sm:$0xff] %vm1231, %v1228
    // Predicated region
    $region14: #{tweet_lstm_forward.1} parent=1 // pred_check
      _
    $region15: #{tweet_lstm_forward.1} parent=1 // pred_check_branch
      %1234 = sbr.rel (0) target = $region17
    $region16: #{tweet_lstm_forward.1} parent=1 // pred_region
      _
    $region17: #{tweet_lstm_forward.1} parent=1 // pred_fallthru
      _
    // Predicated region
    $region18: #{tweet_lstm_forward.1} parent=1 // pred_check
      _
    $region19: #{tweet_lstm_forward.1} parent=1 // pred_check_branch
      %1236 = sbr.rel (0) target = $region21
    $region20: #{tweet_lstm_forward.1} parent=1 // pred_region
      _
    $region21: #{tweet_lstm_forward.1} parent=1 // pred_fallthru
      _
    %1237 = vsyncpa [#allocation3], 1

</llo_original>
